<compile_context>
chip_gen: v7x
topology: tpu7x:2x2x1
jax: 0.10.0
libtpu: 0.0.40
codegen_flags: <defaults>
</compile_context>

<pallas_src>
import jax
import jax.numpy as jnp
from jax.experimental import pallas as pl
from jax.experimental.pallas import tpu as pltpu

# ----- model hyperparameters (module defaults) -----
NUM_ENC_XYZ = 6
NUM_ENC_DIR = 4
HIDDEN = 128
DIM_XYZ = 3 + 2 * 3 * NUM_ENC_XYZ          # 39
DIM_DIR = 3 + 2 * 3 * NUM_ENC_DIR          # 27
DIM_IN = DIM_XYZ + DIM_DIR                 # 66
DIM_EXPR_IN = 15
DIM_EXPR_MID = 2 * DIM_EXPR_IN             # 30
DIM_EXPR_OUT = 4 * DIM_EXPR_IN             # 60
DIM_FA = HIDDEN + 8                        # fused fc_feat|fc_alpha output (136)


def nerf_kernel(x_ref,
                w1x_ref, b1_ref,
                wx_ref, bx_ref,
                wfa_ref, bfa_ref,
                wdf_ref, wdv_ref, bd_ref,
                wr_ref, br_ref,
                o_ref):
    f32 = jnp.float32
    bf16 = jnp.bfloat16

    # in-kernel lane slices of the single [tile_n, 66] bf16 input tile
    xyz = x_ref[:, :DIM_XYZ]
    view = x_ref[:, DIM_XYZ:DIM_XYZ + DIM_DIR]

    # layer1 (expression contribution pre-folded into b1_eff; no relu here,
    # matching the PyTorch forward)
    h = jnp.dot(xyz, w1x_ref[...], preferred_element_type=f32) + b1_ref[...]

    # layers_xyz: 3x relu(Linear(128, 128)); no skip-concat for default config
    for k in range(3):
        h = jnp.maximum(
            jnp.dot(h.astype(bf16), wx_ref[k], preferred_element_type=f32)
            + bx_ref[k:k + 1, :],
            0.0)

    # fused fc_feat | fc_alpha: lanes [0:128] = feat, lane 128 = alpha, rest pad
    fa = jnp.dot(h.astype(bf16), wfa_ref[...], preferred_element_type=f32) + bfa_ref[...]
    feat = jnp.maximum(fa[:, :HIDDEN], 0.0)          # relu only on feat lanes
    alpha = fa[:, HIDDEN:HIDDEN + 1]                 # no activation on alpha

    # layers_dir[0] on cat(feat, view): split matmul avoids an in-kernel lane concat
    hd = (jnp.dot(feat.astype(bf16), wdf_ref[...], preferred_element_type=f32)
          + jnp.dot(view, wdv_ref[...], preferred_element_type=f32)
          + bd_ref[...])
    hd = jnp.maximum(hd, 0.0)
    rgb = jnp.dot(hd.astype(bf16), wr_ref[...], preferred_element_type=f32) + br_ref[...]

    # direct slice stores into the 4-lane output tile (no lane concat)
    o_ref[:, :3] = rgb.astype(o_ref.dtype)
    o_ref[:, 3:4] = alpha.astype(o_ref.dtype)


def init_params(key):
    """Deterministic PyTorch-Linear-style init. Weights stored as [in, out]."""
    def linear(k, fan_in, fan_out):
        kw, kb = jax.random.split(k)
        bound = 1.0 / (fan_in ** 0.5)
        w = jax.random.uniform(kw, (fan_in, fan_out), jnp.float32, -bound, bound)
        b = jax.random.uniform(kb, (1, fan_out), jnp.float32, -bound, bound)
        return w, b

    ks = jax.random.split(key, 10)
    p = {}
    p["we0"], p["be0"] = linear(ks[0], DIM_EXPR_IN, DIM_EXPR_MID)
    p["we1"], p["be1"] = linear(ks[1], DIM_EXPR_MID, DIM_EXPR_OUT)
    w1, p["b1"] = linear(ks[2], DIM_XYZ + DIM_EXPR_OUT, HIDDEN)
    p["w1x"], p["w1e"] = w1[:DIM_XYZ], w1[DIM_XYZ:]
    p["wx0"], p["bx0"] = linear(ks[3], HIDDEN, HIDDEN)
    p["wx1"], p["bx1"] = linear(ks[4], HIDDEN, HIDDEN)
    p["wx2"], p["bx2"] = linear(ks[5], HIDDEN, HIDDEN)
    p["wf"], p["bf"] = linear(ks[6], HIDDEN, HIDDEN)
    p["wa"], p["ba"] = linear(ks[7], HIDDEN, 1)
    wd, p["bd"] = linear(ks[8], HIDDEN + DIM_DIR, HIDDEN // 2)
    p["wdf"], p["wdv"] = wd[:HIDDEN], wd[HIDDEN:]
    p["wr"], p["br"] = linear(ks[9], HIDDEN // 2, 3)
    return p


def _pick_tile(N):
    """Largest tile that divides N while keeping >= 8 grid steps (pipelining +
    both v7x TensorCores busy); falls back to the largest divisor otherwise."""
    candidates = (2048, 1024, 512, 256, 128, 64, 32, 16, 8)
    for t in candidates:
        if N % t == 0 and N // t >= 8:
            return t
    for t in candidates:
        if N % t == 0:
            return t
    return N


def conditional_blendshape_nerf_v2(x, expr, params, *, tile_n=None):
    """x: [N, 66] float (any float dtype), expr: [1, 15] float32 -> [N, 4] float32."""
    N = x.shape[0]
    if tile_n is None:
        tile_n = _pick_tile(N)
    assert N % tile_n == 0, "pad N to a multiple of tile_n"
    # TODO(synk): padded rows (if the caller pads N) are not masked; slice them off.
    f32 = jnp.float32
    bf16 = jnp.bfloat16

    # x in bf16: halves the dominant HBM stream; kernel matmuls are bf16 anyway.
    x_bf = x.astype(bf16)

    # ---- hoisted expression branch (tiny M=1 MLP), folded into layer1 bias ----
    e = expr * (1.0 / 3.0)
    e = jax.nn.relu(e @ params["we0"] + params["be0"])
    e = jax.nn.relu(e @ params["we1"] + params["be1"])          # (1, 60)
    b1_eff = (e @ params["w1e"] + params["b1"]).astype(f32)     # (1, 128)

    # ---- pack / cast weights once, outside the kernel ----
    w1x = params["w1x"].astype(bf16)                            # (39, 128)
    wx_stack = jnp.stack(
        [params["wx0"], params["wx1"], params["wx2"]]).astype(bf16)       # (3,128,128)
    bx_stack = jnp.concatenate(
        [params["bx0"], params["bx1"], params["bx2"]], axis=0).astype(f32)  # (3,128)

    # fused fc_feat | fc_alpha, padded to 136 lanes
    wfa = jnp.concatenate(
        [params["wf"], params["wa"], jnp.zeros((HIDDEN, DIM_FA - HIDDEN - 1), f32)],
        axis=1).astype(bf16)                                    # (128, 136)
    bfa = jnp.concatenate(
        [params["bf"], params["ba"], jnp.zeros((1, DIM_FA - HIDDEN - 1), f32)],
        axis=1).astype(f32)                                     # (1, 136)

    wdf = params["wdf"].astype(bf16)                            # (128, 64)
    wdv = params["wdv"].astype(bf16)                            # (27, 64)
    bd = params["bd"].astype(f32)                               # (1, 64)
    wr = params["wr"].astype(bf16)                              # (64, 3)
    br = params["br"].astype(f32)                               # (1, 3)

    weights = [w1x, b1_eff, wx_stack, bx_stack, wfa, bfa, wdf, wdv, bd, wr, br]

    def full(a):
        nd = a.ndim
        return pl.BlockSpec(a.shape, lambda i: (0,) * nd)

    in_specs = [pl.BlockSpec((tile_n, DIM_IN), lambda i: (i, 0))] + [full(w) for w in weights]

    # ~163K flops / row (6 matmuls), plus per-call weight traffic
    macs_per_row = (DIM_XYZ * HIDDEN + 3 * HIDDEN * HIDDEN + HIDDEN * DIM_FA
                    + HIDDEN * (HIDDEN // 2) + DIM_DIR * (HIDDEN // 2) + (HIDDEN // 2) * 3)
    weight_bytes = int(sum(int(w.size) * w.dtype.itemsize for w in weights))
    cost = pl.CostEstimate(
        flops=2 * macs_per_row * N,
        transcendentals=0,
        bytes_accessed=N * DIM_IN * 2 + N * 4 * 4 + weight_bytes,
    )

    out = pl.pallas_call(
        nerf_kernel,
        out_shape=jax.ShapeDtypeStruct((N, 4), jnp.float32),
        grid=(N // tile_n,),
        in_specs=in_specs,
        out_specs=pl.BlockSpec((tile_n, 4), lambda i: (i, 0)),
        compiler_params=pltpu.CompilerParams(
            dimension_semantics=("parallel",),
            vmem_limit_bytes=32 * 1024 * 1024,   # safe headroom for tile_n up to 2048 on v5e
        ),
        cost_estimate=cost,
    )(x_bf, *weights)
    return out


def reference_forward(x, expr, params):
    """Pure-JAX f32 replica of the PyTorch forward, for correctness check."""
    xyz = x[:, :DIM_XYZ]
    view = x[:, DIM_XYZ:DIM_XYZ + DIM_DIR]
    e = expr * (1.0 / 3.0)
    e = jax.nn.relu(e @ params["we0"] + params["be0"])
    e = jax.nn.relu(e @ params["we1"] + params["be1"])
    e = jnp.tile(e, (xyz.shape[0], 1))
    h = jnp.concatenate([xyz, e], axis=1)
    w1 = jnp.concatenate([params["w1x"], params["w1e"]], axis=0)
    h = h @ w1 + params["b1"]
    for n in ("x0", "x1", "x2"):
        h = jax.nn.relu(h @ params["w" + n] + params["b" + n])
    feat = jax.nn.relu(h @ params["wf"] + params["bf"])
    alpha = h @ params["wa"] + params["ba"]
    wd = jnp.concatenate([params["wdf"], params["wdv"]], axis=0)
    hd = jax.nn.relu(jnp.concatenate([feat, view], axis=1) @ wd + params["bd"])
    rgb = hd @ params["wr"] + params["br"]
    return jnp.concatenate([rgb, alpha], axis=-1)


if __name__ == "__main__":
    key = jax.random.PRNGKey(0)
    k_x, k_e, k_p = jax.random.split(key, 3)

    N = 2048          # demo rays/samples; tile auto-picks 256 -> grid of 8 steps
    x = jax.random.normal(k_x, (N, DIM_IN), jnp.float32)          # [2048, 66]
    expr = jax.random.normal(k_e, (1, DIM_EXPR_IN), jnp.float32)  # [1, 15]
    params = init_params(k_p)

    out = conditional_blendshape_nerf_v2(x, expr, params)
    out = jax.block_until_ready(out)

    ref = jax.block_until_ready(reference_forward(x, expr, params))
    assert out.shape == (N, 4)
    # bf16 matmul operands (f32 accumulation) -> relaxed tolerance vs f32 reference
    max_err = float(jnp.max(jnp.abs(out - ref)))
    assert max_err < 5e-2, f"mismatch vs pure-JAX reference (max abs err {max_err})"

    print("KERNEL_OK")
</pallas_src>

<mosaic_0001>
module attributes {stable_mosaic.version = 11 : i64} {
  func.func @nerf_kernel(%arg0: i32, %arg1: memref<256x66xbf16, #tpu.memory_space<vmem>>, %arg2: memref<39x128xbf16, #tpu.memory_space<vmem>>, %arg3: memref<1x128xf32, #tpu.memory_space<vmem>>, %arg4: memref<3x128x128xbf16, #tpu.memory_space<vmem>>, %arg5: memref<3x128xf32, #tpu.memory_space<vmem>>, %arg6: memref<128x136xbf16, #tpu.memory_space<vmem>>, %arg7: memref<1x136xf32, #tpu.memory_space<vmem>>, %arg8: memref<128x64xbf16, #tpu.memory_space<vmem>>, %arg9: memref<27x64xbf16, #tpu.memory_space<vmem>>, %arg10: memref<1x64xf32, #tpu.memory_space<vmem>>, %arg11: memref<64x3xbf16, #tpu.memory_space<vmem>>, %arg12: memref<1x3xf32, #tpu.memory_space<vmem>>, %arg13: memref<256x4xf32, #tpu.memory_space<vmem>>) attributes {dimension_semantics = [#tpu.dimension_semantics<parallel>], iteration_bounds = array<i64: 8>, scalar_prefetch = 0 : i64, scratch_operands = 0 : i64, tpu.core_type = #tpu.core_type<tc>, window_params = [{transform_indices = @transform_0, window_bounds = array<i64: 256, 66>}, {pipeline_mode = #tpu.pipeline_mode<synchronous>, transform_indices = @transform_1, window_bounds = array<i64: 39, 128>}, {pipeline_mode = #tpu.pipeline_mode<synchronous>, transform_indices = @transform_2, window_bounds = array<i64: 1, 128>}, {pipeline_mode = #tpu.pipeline_mode<synchronous>, transform_indices = @transform_3, window_bounds = array<i64: 3, 128, 128>}, {pipeline_mode = #tpu.pipeline_mode<synchronous>, transform_indices = @transform_4, window_bounds = array<i64: 3, 128>}, {pipeline_mode = #tpu.pipeline_mode<synchronous>, transform_indices = @transform_5, window_bounds = array<i64: 128, 136>}, {pipeline_mode = #tpu.pipeline_mode<synchronous>, transform_indices = @transform_6, window_bounds = array<i64: 1, 136>}, {pipeline_mode = #tpu.pipeline_mode<synchronous>, transform_indices = @transform_7, window_bounds = array<i64: 128, 64>}, {pipeline_mode = #tpu.pipeline_mode<synchronous>, transform_indices = @transform_8, window_bounds = array<i64: 27, 64>}, {pipeline_mode = #tpu.pipeline_mode<synchronous>, transform_indices = @transform_9, window_bounds = array<i64: 1, 64>}, {pipeline_mode = #tpu.pipeline_mode<synchronous>, transform_indices = @transform_10, window_bounds = array<i64: 64, 3>}, {pipeline_mode = #tpu.pipeline_mode<synchronous>, transform_indices = @transform_11, window_bounds = array<i64: 1, 3>}, {transform_indices = @transform_12, window_bounds = array<i64: 256, 4>}]} {
    %c0 = arith.constant 0 : index
    %c0_0 = arith.constant 0 : index
    %0 = vector.load %arg1[%c0, %c0_0] : memref<256x66xbf16, #tpu.memory_space<vmem>>, vector<256x39xbf16>
    %c0_1 = arith.constant 0 : index
    %c39 = arith.constant 39 : index
    %1 = vector.load %arg1[%c0_1, %c39] : memref<256x66xbf16, #tpu.memory_space<vmem>>, vector<256x27xbf16>
    %c0_2 = arith.constant 0 : index
    %c0_3 = arith.constant 0 : index
    %2 = vector.load %arg2[%c0_2, %c0_3] : memref<39x128xbf16, #tpu.memory_space<vmem>>, vector<39x128xbf16>
    %cst = arith.constant dense<0.000000e+00> : vector<256x128xf32>
    %3 = tpu.matmul %0, %2, %cst {dimension_numbers = #tpu.dot_dimension_numbers<[1], [0], [0], [1], [0, 0, 1, 1], [], []>} : vector<256x39xbf16>, vector<39x128xbf16>, vector<256x128xf32> -> vector<256x128xf32>
    %c0_4 = arith.constant 0 : index
    %c0_5 = arith.constant 0 : index
    %4 = vector.load %arg3[%c0_4, %c0_5] : memref<1x128xf32, #tpu.memory_space<vmem>>, vector<1x128xf32>
    %5 = vector.broadcast %4 : vector<1x128xf32> to vector<256x128xf32>
    %6 = arith.addf %3, %5 : vector<256x128xf32>
    %7 = arith.truncf %6 : vector<256x128xf32> to vector<256x128xbf16>
    %c0_6 = arith.constant 0 : index
    %c0_7 = arith.constant 0 : index
    %c0_8 = arith.constant 0 : index
    %8 = vector.load %arg4[%c0_6, %c0_7, %c0_8] : memref<3x128x128xbf16, #tpu.memory_space<vmem>>, vector<1x128x128xbf16>
    %9 = vector.shape_cast %8 : vector<1x128x128xbf16> to vector<128x128xbf16>
    %cst_9 = arith.constant dense<0.000000e+00> : vector<256x128xf32>
    %10 = tpu.matmul %7, %9, %cst_9 {dimension_numbers = #tpu.dot_dimension_numbers<[1], [0], [0], [1], [0, 0, 1, 1], [], []>} : vector<256x128xbf16>, vector<128x128xbf16>, vector<256x128xf32> -> vector<256x128xf32>
    %c0_10 = arith.constant 0 : index
    %c0_11 = arith.constant 0 : index
    %11 = vector.load %arg5[%c0_10, %c0_11] : memref<3x128xf32, #tpu.memory_space<vmem>>, vector<1x128xf32>
    %12 = vector.broadcast %11 : vector<1x128xf32> to vector<256x128xf32>
    %13 = arith.addf %10, %12 : vector<256x128xf32>
    %cst_12 = arith.constant 0.000000e+00 : f32
    %14 = vector.broadcast %cst_12 : f32 to vector<256x128xf32>
    %15 = arith.maximumf %13, %14 : vector<256x128xf32>
    %16 = arith.truncf %15 : vector<256x128xf32> to vector<256x128xbf16>
    %c1 = arith.constant 1 : index
    %c0_13 = arith.constant 0 : index
    %c0_14 = arith.constant 0 : index
    %17 = vector.load %arg4[%c1, %c0_13, %c0_14] : memref<3x128x128xbf16, #tpu.memory_space<vmem>>, vector<1x128x128xbf16>
    %18 = vector.shape_cast %17 : vector<1x128x128xbf16> to vector<128x128xbf16>
    %cst_15 = arith.constant dense<0.000000e+00> : vector<256x128xf32>
    %19 = tpu.matmul %16, %18, %cst_15 {dimension_numbers = #tpu.dot_dimension_numbers<[1], [0], [0], [1], [0, 0, 1, 1], [], []>} : vector<256x128xbf16>, vector<128x128xbf16>, vector<256x128xf32> -> vector<256x128xf32>
    %c1_16 = arith.constant 1 : index
    %c0_17 = arith.constant 0 : index
    %20 = vector.load %arg5[%c1_16, %c0_17] : memref<3x128xf32, #tpu.memory_space<vmem>>, vector<1x128xf32>
    %21 = vector.broadcast %20 : vector<1x128xf32> to vector<256x128xf32>
    %22 = arith.addf %19, %21 : vector<256x128xf32>
    %cst_18 = arith.constant 0.000000e+00 : f32
    %23 = vector.broadcast %cst_18 : f32 to vector<256x128xf32>
    %24 = arith.maximumf %22, %23 : vector<256x128xf32>
    %25 = arith.truncf %24 : vector<256x128xf32> to vector<256x128xbf16>
    %c2 = arith.constant 2 : index
    %c0_19 = arith.constant 0 : index
    %c0_20 = arith.constant 0 : index
    %26 = vector.load %arg4[%c2, %c0_19, %c0_20] : memref<3x128x128xbf16, #tpu.memory_space<vmem>>, vector<1x128x128xbf16>
    %27 = vector.shape_cast %26 : vector<1x128x128xbf16> to vector<128x128xbf16>
    %cst_21 = arith.constant dense<0.000000e+00> : vector<256x128xf32>
    %28 = tpu.matmul %25, %27, %cst_21 {dimension_numbers = #tpu.dot_dimension_numbers<[1], [0], [0], [1], [0, 0, 1, 1], [], []>} : vector<256x128xbf16>, vector<128x128xbf16>, vector<256x128xf32> -> vector<256x128xf32>
    %c2_22 = arith.constant 2 : index
    %c0_23 = arith.constant 0 : index
    %29 = vector.load %arg5[%c2_22, %c0_23] : memref<3x128xf32, #tpu.memory_space<vmem>>, vector<1x128xf32>
    %30 = vector.broadcast %29 : vector<1x128xf32> to vector<256x128xf32>
    %31 = arith.addf %28, %30 : vector<256x128xf32>
    %cst_24 = arith.constant 0.000000e+00 : f32
    %32 = vector.broadcast %cst_24 : f32 to vector<256x128xf32>
    %33 = arith.maximumf %31, %32 : vector<256x128xf32>
    %34 = arith.truncf %33 : vector<256x128xf32> to vector<256x128xbf16>
    %c0_25 = arith.constant 0 : index
    %c0_26 = arith.constant 0 : index
    %35 = vector.load %arg6[%c0_25, %c0_26] : memref<128x136xbf16, #tpu.memory_space<vmem>>, vector<128x136xbf16>
    %cst_27 = arith.constant dense<0.000000e+00> : vector<256x136xf32>
    %36 = tpu.matmul %34, %35, %cst_27 {dimension_numbers = #tpu.dot_dimension_numbers<[1], [0], [0], [1], [0, 0, 1, 1], [], []>} : vector<256x128xbf16>, vector<128x136xbf16>, vector<256x136xf32> -> vector<256x136xf32>
    %c0_28 = arith.constant 0 : index
    %c0_29 = arith.constant 0 : index
    %37 = vector.load %arg7[%c0_28, %c0_29] : memref<1x136xf32, #tpu.memory_space<vmem>>, vector<1x136xf32>
    %38 = vector.broadcast %37 : vector<1x136xf32> to vector<256x136xf32>
    %39 = arith.addf %36, %38 : vector<256x136xf32>
    %40 = vector.extract_strided_slice %39 {offsets = [0, 0], sizes = [256, 128], strides = [1, 1]} : vector<256x136xf32> to vector<256x128xf32>
    %cst_30 = arith.constant 0.000000e+00 : f32
    %41 = vector.broadcast %cst_30 : f32 to vector<256x128xf32>
    %42 = arith.maximumf %40, %41 : vector<256x128xf32>
    %43 = vector.extract_strided_slice %39 {offsets = [0, 128], sizes = [256, 1], strides = [1, 1]} : vector<256x136xf32> to vector<256x1xf32>
    %44 = arith.truncf %42 : vector<256x128xf32> to vector<256x128xbf16>
    %c0_31 = arith.constant 0 : index
    %c0_32 = arith.constant 0 : index
    %45 = vector.load %arg8[%c0_31, %c0_32] : memref<128x64xbf16, #tpu.memory_space<vmem>>, vector<128x64xbf16>
    %cst_33 = arith.constant dense<0.000000e+00> : vector<256x64xf32>
    %46 = tpu.matmul %44, %45, %cst_33 {dimension_numbers = #tpu.dot_dimension_numbers<[1], [0], [0], [1], [0, 0, 1, 1], [], []>} : vector<256x128xbf16>, vector<128x64xbf16>, vector<256x64xf32> -> vector<256x64xf32>
    %c0_34 = arith.constant 0 : index
    %c0_35 = arith.constant 0 : index
    %47 = vector.load %arg9[%c0_34, %c0_35] : memref<27x64xbf16, #tpu.memory_space<vmem>>, vector<27x64xbf16>
    %cst_36 = arith.constant dense<0.000000e+00> : vector<256x64xf32>
    %48 = tpu.matmul %1, %47, %cst_36 {dimension_numbers = #tpu.dot_dimension_numbers<[1], [0], [0], [1], [0, 0, 1, 1], [], []>} : vector<256x27xbf16>, vector<27x64xbf16>, vector<256x64xf32> -> vector<256x64xf32>
    %49 = arith.addf %46, %48 : vector<256x64xf32>
    %c0_37 = arith.constant 0 : index
    %c0_38 = arith.constant 0 : index
    %50 = vector.load %arg10[%c0_37, %c0_38] : memref<1x64xf32, #tpu.memory_space<vmem>>, vector<1x64xf32>
    %51 = vector.broadcast %50 : vector<1x64xf32> to vector<256x64xf32>
    %52 = arith.addf %49, %51 : vector<256x64xf32>
    %cst_39 = arith.constant 0.000000e+00 : f32
    %53 = vector.broadcast %cst_39 : f32 to vector<256x64xf32>
    %54 = arith.maximumf %52, %53 : vector<256x64xf32>
    %55 = arith.truncf %54 : vector<256x64xf32> to vector<256x64xbf16>
    %c0_40 = arith.constant 0 : index
    %c0_41 = arith.constant 0 : index
    %56 = vector.load %arg11[%c0_40, %c0_41] : memref<64x3xbf16, #tpu.memory_space<vmem>>, vector<64x3xbf16>
    %cst_42 = arith.constant dense<0.000000e+00> : vector<256x3xf32>
    %57 = tpu.matmul %55, %56, %cst_42 {dimension_numbers = #tpu.dot_dimension_numbers<[1], [0], [0], [1], [0, 0, 1, 1], [], []>} : vector<256x64xbf16>, vector<64x3xbf16>, vector<256x3xf32> -> vector<256x3xf32>
    %c0_43 = arith.constant 0 : index
    %c0_44 = arith.constant 0 : index
    %58 = vector.load %arg12[%c0_43, %c0_44] : memref<1x3xf32, #tpu.memory_space<vmem>>, vector<1x3xf32>
    %59 = vector.broadcast %58 : vector<1x3xf32> to vector<256x3xf32>
    %60 = arith.addf %57, %59 : vector<256x3xf32>
    %c0_45 = arith.constant 0 : index
    %c0_46 = arith.constant 0 : index
    %61 = vector.load %arg13[%c0_45, %c0_46] : memref<256x4xf32, #tpu.memory_space<vmem>>, vector<256x3xf32>
    tpu.vector_store %arg13[%c0_45, %c0_46], %60 {strides = array<i32>} : memref<256x4xf32, #tpu.memory_space<vmem>>, vector<256x3xf32>,
    %c0_47 = arith.constant 0 : index
    %c3 = arith.constant 3 : index
    %62 = vector.load %arg13[%c0_47, %c3] : memref<256x4xf32, #tpu.memory_space<vmem>>, vector<256x1xf32>
    tpu.vector_store %arg13[%c0_47, %c3], %43 {strides = array<i32>} : memref<256x4xf32, #tpu.memory_space<vmem>>, vector<256x1xf32>,
    return
  }
  func.func @transform_0(%arg0: i32) -> (i32, i32) {
    %c0_i32 = arith.constant 0 : i32
    %c0_i32_0 = arith.constant 0 : i32
    return %arg0, %c0_i32 : i32, i32
  }
  func.func @transform_1(%arg0: i32) -> (i32, i32) {
    %c0_i32 = arith.constant 0 : i32
    %c0_i32_0 = arith.constant 0 : i32
    %c0_i32_1 = arith.constant 0 : i32
    return %c0_i32, %c0_i32_0 : i32, i32
  }
  func.func @transform_2(%arg0: i32) -> (i32, i32) {
    %c0_i32 = arith.constant 0 : i32
    %c0_i32_0 = arith.constant 0 : i32
    %c0_i32_1 = arith.constant 0 : i32
    return %c0_i32, %c0_i32_0 : i32, i32
  }
  func.func @transform_3(%arg0: i32) -> (i32, i32, i32) {
    %c0_i32 = arith.constant 0 : i32
    %c0_i32_0 = arith.constant 0 : i32
    %c0_i32_1 = arith.constant 0 : i32
    %c0_i32_2 = arith.constant 0 : i32
    return %c0_i32, %c0_i32_0, %c0_i32_1 : i32, i32, i32
  }
  func.func @transform_4(%arg0: i32) -> (i32, i32) {
    %c0_i32 = arith.constant 0 : i32
    %c0_i32_0 = arith.constant 0 : i32
    %c0_i32_1 = arith.constant 0 : i32
    return %c0_i32, %c0_i32_0 : i32, i32
  }
  func.func @transform_5(%arg0: i32) -> (i32, i32) {
    %c0_i32 = arith.constant 0 : i32
    %c0_i32_0 = arith.constant 0 : i32
    %c0_i32_1 = arith.constant 0 : i32
    return %c0_i32, %c0_i32_0 : i32, i32
  }
  func.func @transform_6(%arg0: i32) -> (i32, i32) {
    %c0_i32 = arith.constant 0 : i32
    %c0_i32_0 = arith.constant 0 : i32
    %c0_i32_1 = arith.constant 0 : i32
    return %c0_i32, %c0_i32_0 : i32, i32
  }
  func.func @transform_7(%arg0: i32) -> (i32, i32) {
    %c0_i32 = arith.constant 0 : i32
    %c0_i32_0 = arith.constant 0 : i32
    %c0_i32_1 = arith.constant 0 : i32
    return %c0_i32, %c0_i32_0 : i32, i32
  }
  func.func @transform_8(%arg0: i32) -> (i32, i32) {
    %c0_i32 = arith.constant 0 : i32
    %c0_i32_0 = arith.constant 0 : i32
    %c0_i32_1 = arith.constant 0 : i32
    return %c0_i32, %c0_i32_0 : i32, i32
  }
  func.func @transform_9(%arg0: i32) -> (i32, i32) {
    %c0_i32 = arith.constant 0 : i32
    %c0_i32_0 = arith.constant 0 : i32
    %c0_i32_1 = arith.constant 0 : i32
    return %c0_i32, %c0_i32_0 : i32, i32
  }
  func.func @transform_10(%arg0: i32) -> (i32, i32) {
    %c0_i32 = arith.constant 0 : i32
    %c0_i32_0 = arith.constant 0 : i32
    %c0_i32_1 = arith.constant 0 : i32
    return %c0_i32, %c0_i32_0 : i32, i32
  }
  func.func @transform_11(%arg0: i32) -> (i32, i32) {
    %c0_i32 = arith.constant 0 : i32
    %c0_i32_0 = arith.constant 0 : i32
    %c0_i32_1 = arith.constant 0 : i32
    return %c0_i32, %c0_i32_0 : i32, i32
  }
  func.func @transform_12(%arg0: i32) -> (i32, i32) {
    %c0_i32 = arith.constant 0 : i32
    %c0_i32_0 = arith.constant 0 : i32
    return %arg0, %c0_i32 : i32, i32
  }
}

</mosaic_0001>

<llo_original>
// kernel: tpu_custom_call.1
$region0: #{tpu_custom_call.1}
  #allocation0 [shape = 'u32[]', space=smem, size = 0x4, offset = 0x4, fixed_abs, tag = 'smem constant byte address 0x4 - core index']
  #allocation1 [shape = 'u32[144,128]{1,0:T(1,128)}', space=vmem, size = 0x12000, scoped, tag = 'internal scratch']
  %s0 = inlined_call_operand.vmem [shape: bf16[2048,66], index: 0, kind: input, shape index: {}]
  %s1 = inlined_call_operand.vmem [shape: bf16[39,128], index: 1, kind: input, shape index: {}]
  %s2 = inlined_call_operand.vmem [shape: f32[1,128], index: 2, kind: input, shape index: {}]
  %s3 = inlined_call_operand.vmem [shape: bf16[3,128,128], index: 3, kind: input, shape index: {}]
  %s4 = inlined_call_operand.vmem [shape: f32[3,128], index: 4, kind: input, shape index: {}]
  %s5 = inlined_call_operand.vmem [shape: bf16[128,136], index: 5, kind: input, shape index: {}]
  %s6 = inlined_call_operand.vmem [shape: f32[1,136], index: 6, kind: input, shape index: {}]
  %s7 = inlined_call_operand.vmem [shape: bf16[128,64], index: 7, kind: input, shape index: {}]
  %s8 = inlined_call_operand.vmem [shape: bf16[27,64], index: 8, kind: input, shape index: {}]
  %s9 = inlined_call_operand.vmem [shape: f32[1,64], index: 9, kind: input, shape index: {}]
  %s10 = inlined_call_operand.vmem [shape: bf16[64,3], index: 10, kind: input, shape index: {}]
  %s11 = inlined_call_operand.vmem [shape: f32[1,3], index: 11, kind: input, shape index: {}]
  %s12 = inlined_call_operand.vmem [shape: f32[2048,4], index: 12, kind: output, shape index: {}]
  %s13 = sld [smem:[#allocation0]]
  $region81: #{tpu_custom_call.1} parent=0
    _
  %s15 = ssub.s32 1, %s13
  %s16 = scalar_select 0, %s15, %s13
  loop: start=0, step=1, limit=10
  $region2: #{tpu_custom_call.1} parent=0 // loop_pre_header
    _
  $region3: #{tpu_custom_call.1} parent=0 // loop_header
    %s18 = sphi 0, %s22
    %p19 = scmp.ge.s32.totalorder %s18, 10
    %s28 = sphi 0, %s30
    %s31 = sphi 0, %s28
    %s32 = sphi 0, %s31
    %s48 = sphi 0, %s32
    %s52 = sphi 0, %s52
    %s54 = sphi 0, %s52
    %s55 = sphi 0, %s54
    %s69 = sphi 0, %s55
    %s73 = sphi 0, %s73
    %s75 = sphi 0, %s73
    %s76 = sphi 0, %s75
    %s90 = sphi 0, %s76
    %s94 = sphi 0, %s94
    %s96 = sphi 0, %s94
    %s97 = sphi 0, %s96
    %s111 = sphi 0, %s97
    %s115 = sphi 0, %s115
    %s117 = sphi 0, %s115
    %s118 = sphi 0, %s117
    %s132 = sphi 0, %s118
    %s136 = sphi 0, %s136
    %s138 = sphi 0, %s136
    %s139 = sphi 0, %s138
    %s153 = sphi 0, %s139
    %s157 = sphi 0, %s157
    %s159 = sphi 0, %s157
    %s160 = sphi 0, %s159
    %s174 = sphi 0, %s160
    %s178 = sphi 0, %s178
    %s180 = sphi 0, %s178
    %s181 = sphi 0, %s180
    %s195 = sphi 0, %s181
    %s199 = sphi 0, %s199
    %s201 = sphi 0, %s199
    %s202 = sphi 0, %s201
    %s216 = sphi 0, %s202
    %s220 = sphi 0, %s220
    %s222 = sphi 0, %s220
    %s223 = sphi 0, %s222
    %s237 = sphi 0, %s223
    %s241 = sphi 0, %s241
    %s243 = sphi 0, %s241
    %s244 = sphi 0, %s243
    %s258 = sphi 0, %s244
    %s262 = sphi 0, %s262
    %s264 = sphi 0, %s262
    %s265 = sphi 0, %s264
    %s279 = sphi 0, %s265
    %s285 = sphi 0, %s287
    %s288 = sphi 0, %s285
    %s289 = sphi 0, %s288
    %s305 = sphi 0, %s289
  $region4: #{tpu_custom_call.1} parent=0 // loop_header_branch
    %21 = sbr.rel (%p19) target = $region8
  $region5: #{tpu_custom_call.1} parent=0 // loop_body
    %s23 = ssub.s32 %s18, 1
    %s24 = ssub.s32 %s18, 2
    %s25 = sadd.s32 %s18, 1
    %s26 = ssub.s32 %s18, %s25
    %p27 = scmp.eq.s32.totalorder %s26, 0
    %s29 = sadd.s32 %s28, 1
    %s30 = scalar_select %p27, %s28, %s29
    %p33 = pneg %p27
    %p34 = scmp.eq.s32.totalorder %s18, 7
    %p35 = por %p33, %p34
    %p36 = scmp.ne.s32.totalorder %s28, %s31
    %p37 = scmp.eq.s32.totalorder %s18, 0
    %p38 = por %p36, %p37
    %p39 = scmp.ne.s32.totalorder %s28, %s31
    %p40 = scmp.eq.s32.totalorder %s23, 7
    %p41 = por %p39, %p40
    %p42 = scmp.ne.s32.totalorder %s31, %s32
    %p43 = scmp.eq.s32.totalorder %s23, 0
    %p44 = por %p42, %p43
    %p45 = scmp.ne.s32.totalorder %s31, %s32
    %p46 = scmp.eq.s32.totalorder %s24, 7
    %p47 = por %p45, %p46
    %p49 = scmp.ne.s32.totalorder %s32, %s48
    %p50 = scmp.eq.s32.totalorder %s24, 0
    %p51 = por %p49, %p50
    %s53 = sadd.s32 %s52, 1
    %p56 = scmp.eq.s32.totalorder %s18, 7
    %p57 = scmp.ne.s32.totalorder %s52, %s54
    %p58 = scmp.eq.s32.totalorder %s18, 0
    %p59 = por %p57, %p58
    %p60 = scmp.ne.s32.totalorder %s52, %s54
    %p61 = scmp.eq.s32.totalorder %s23, 7
    %p62 = por %p60, %p61
    %p63 = scmp.ne.s32.totalorder %s54, %s55
    %p64 = scmp.eq.s32.totalorder %s23, 0
    %p65 = por %p63, %p64
    %p66 = scmp.ne.s32.totalorder %s54, %s55
    %p67 = scmp.eq.s32.totalorder %s24, 7
    %p68 = por %p66, %p67
    %p70 = scmp.ne.s32.totalorder %s55, %s69
    %p71 = scmp.eq.s32.totalorder %s24, 0
    %p72 = por %p70, %p71
    %s74 = sadd.s32 %s73, 1
    %p77 = scmp.eq.s32.totalorder %s18, 7
    %p78 = scmp.ne.s32.totalorder %s73, %s75
    %p79 = scmp.eq.s32.totalorder %s18, 0
    %p80 = por %p78, %p79
    %p81 = scmp.ne.s32.totalorder %s73, %s75
    %p82 = scmp.eq.s32.totalorder %s23, 7
    %p83 = por %p81, %p82
    %p84 = scmp.ne.s32.totalorder %s75, %s76
    %p85 = scmp.eq.s32.totalorder %s23, 0
    %p86 = por %p84, %p85
    %p87 = scmp.ne.s32.totalorder %s75, %s76
    %p88 = scmp.eq.s32.totalorder %s24, 7
    %p89 = por %p87, %p88
    %p91 = scmp.ne.s32.totalorder %s76, %s90
    %p92 = scmp.eq.s32.totalorder %s24, 0
    %p93 = por %p91, %p92
    %s95 = sadd.s32 %s94, 1
    %p98 = scmp.eq.s32.totalorder %s18, 7
    %p99 = scmp.ne.s32.totalorder %s94, %s96
    %p100 = scmp.eq.s32.totalorder %s18, 0
    %p101 = por %p99, %p100
    %p102 = scmp.ne.s32.totalorder %s94, %s96
    %p103 = scmp.eq.s32.totalorder %s23, 7
    %p104 = por %p102, %p103
    %p105 = scmp.ne.s32.totalorder %s96, %s97
    %p106 = scmp.eq.s32.totalorder %s23, 0
    %p107 = por %p105, %p106
    %p108 = scmp.ne.s32.totalorder %s96, %s97
    %p109 = scmp.eq.s32.totalorder %s24, 7
    %p110 = por %p108, %p109
    %p112 = scmp.ne.s32.totalorder %s97, %s111
    %p113 = scmp.eq.s32.totalorder %s24, 0
    %p114 = por %p112, %p113
    %s116 = sadd.s32 %s115, 1
    %p119 = scmp.eq.s32.totalorder %s18, 7
    %p120 = scmp.ne.s32.totalorder %s115, %s117
    %p121 = scmp.eq.s32.totalorder %s18, 0
    %p122 = por %p120, %p121
    %p123 = scmp.ne.s32.totalorder %s115, %s117
    %p124 = scmp.eq.s32.totalorder %s23, 7
    %p125 = por %p123, %p124
    %p126 = scmp.ne.s32.totalorder %s117, %s118
    %p127 = scmp.eq.s32.totalorder %s23, 0
    %p128 = por %p126, %p127
    %p129 = scmp.ne.s32.totalorder %s117, %s118
    %p130 = scmp.eq.s32.totalorder %s24, 7
    %p131 = por %p129, %p130
    %p133 = scmp.ne.s32.totalorder %s118, %s132
    %p134 = scmp.eq.s32.totalorder %s24, 0
    %p135 = por %p133, %p134
    %s137 = sadd.s32 %s136, 1
    %p140 = scmp.eq.s32.totalorder %s18, 7
    %p141 = scmp.ne.s32.totalorder %s136, %s138
    %p142 = scmp.eq.s32.totalorder %s18, 0
    %p143 = por %p141, %p142
    %p144 = scmp.ne.s32.totalorder %s136, %s138
    %p145 = scmp.eq.s32.totalorder %s23, 7
    %p146 = por %p144, %p145
    %p147 = scmp.ne.s32.totalorder %s138, %s139
    %p148 = scmp.eq.s32.totalorder %s23, 0
    %p149 = por %p147, %p148
    %p150 = scmp.ne.s32.totalorder %s138, %s139
    %p151 = scmp.eq.s32.totalorder %s24, 7
    %p152 = por %p150, %p151
    %p154 = scmp.ne.s32.totalorder %s139, %s153
    %p155 = scmp.eq.s32.totalorder %s24, 0
    %p156 = por %p154, %p155
    %s158 = sadd.s32 %s157, 1
    %p161 = scmp.eq.s32.totalorder %s18, 7
    %p162 = scmp.ne.s32.totalorder %s157, %s159
    %p163 = scmp.eq.s32.totalorder %s18, 0
    %p164 = por %p162, %p163
    %p165 = scmp.ne.s32.totalorder %s157, %s159
    %p166 = scmp.eq.s32.totalorder %s23, 7
    %p167 = por %p165, %p166
    %p168 = scmp.ne.s32.totalorder %s159, %s160
    %p169 = scmp.eq.s32.totalorder %s23, 0
    %p170 = por %p168, %p169
    %p171 = scmp.ne.s32.totalorder %s159, %s160
    %p172 = scmp.eq.s32.totalorder %s24, 7
    %p173 = por %p171, %p172
    %p175 = scmp.ne.s32.totalorder %s160, %s174
    %p176 = scmp.eq.s32.totalorder %s24, 0
    %p177 = por %p175, %p176
    %s179 = sadd.s32 %s178, 1
    %p182 = scmp.eq.s32.totalorder %s18, 7
    %p183 = scmp.ne.s32.totalorder %s178, %s180
    %p184 = scmp.eq.s32.totalorder %s18, 0
    %p185 = por %p183, %p184
    %p186 = scmp.ne.s32.totalorder %s178, %s180
    %p187 = scmp.eq.s32.totalorder %s23, 7
    %p188 = por %p186, %p187
    %p189 = scmp.ne.s32.totalorder %s180, %s181
    %p190 = scmp.eq.s32.totalorder %s23, 0
    %p191 = por %p189, %p190
    %p192 = scmp.ne.s32.totalorder %s180, %s181
    %p193 = scmp.eq.s32.totalorder %s24, 7
    %p194 = por %p192, %p193
    %p196 = scmp.ne.s32.totalorder %s181, %s195
    %p197 = scmp.eq.s32.totalorder %s24, 0
    %p198 = por %p196, %p197
    %s200 = sadd.s32 %s199, 1
    %p203 = scmp.eq.s32.totalorder %s18, 7
    %p204 = scmp.ne.s32.totalorder %s199, %s201
    %p205 = scmp.eq.s32.totalorder %s18, 0
    %p206 = por %p204, %p205
    %p207 = scmp.ne.s32.totalorder %s199, %s201
    %p208 = scmp.eq.s32.totalorder %s23, 7
    %p209 = por %p207, %p208
    %p210 = scmp.ne.s32.totalorder %s201, %s202
    %p211 = scmp.eq.s32.totalorder %s23, 0
    %p212 = por %p210, %p211
    %p213 = scmp.ne.s32.totalorder %s201, %s202
    %p214 = scmp.eq.s32.totalorder %s24, 7
    %p215 = por %p213, %p214
    %p217 = scmp.ne.s32.totalorder %s202, %s216
    %p218 = scmp.eq.s32.totalorder %s24, 0
    %p219 = por %p217, %p218
    %s221 = sadd.s32 %s220, 1
    %p224 = scmp.eq.s32.totalorder %s18, 7
    %p225 = scmp.ne.s32.totalorder %s220, %s222
    %p226 = scmp.eq.s32.totalorder %s18, 0
    %p227 = por %p225, %p226
    %p228 = scmp.ne.s32.totalorder %s220, %s222
    %p229 = scmp.eq.s32.totalorder %s23, 7
    %p230 = por %p228, %p229
    %p231 = scmp.ne.s32.totalorder %s222, %s223
    %p232 = scmp.eq.s32.totalorder %s23, 0
    %p233 = por %p231, %p232
    %p234 = scmp.ne.s32.totalorder %s222, %s223
    %p235 = scmp.eq.s32.totalorder %s24, 7
    %p236 = por %p234, %p235
    %p238 = scmp.ne.s32.totalorder %s223, %s237
    %p239 = scmp.eq.s32.totalorder %s24, 0
    %p240 = por %p238, %p239
    %s242 = sadd.s32 %s241, 1
    %p245 = scmp.eq.s32.totalorder %s18, 7
    %p246 = scmp.ne.s32.totalorder %s241, %s243
    %p247 = scmp.eq.s32.totalorder %s18, 0
    %p248 = por %p246, %p247
    %p249 = scmp.ne.s32.totalorder %s241, %s243
    %p250 = scmp.eq.s32.totalorder %s23, 7
    %p251 = por %p249, %p250
    %p252 = scmp.ne.s32.totalorder %s243, %s244
    %p253 = scmp.eq.s32.totalorder %s23, 0
    %p254 = por %p252, %p253
    %p255 = scmp.ne.s32.totalorder %s243, %s244
    %p256 = scmp.eq.s32.totalorder %s24, 7
    %p257 = por %p255, %p256
    %p259 = scmp.ne.s32.totalorder %s244, %s258
    %p260 = scmp.eq.s32.totalorder %s24, 0
    %p261 = por %p259, %p260
    %s263 = sadd.s32 %s262, 1
    %p266 = scmp.eq.s32.totalorder %s18, 7
    %p267 = scmp.ne.s32.totalorder %s262, %s264
    %p268 = scmp.eq.s32.totalorder %s18, 0
    %p269 = por %p267, %p268
    %p270 = scmp.ne.s32.totalorder %s262, %s264
    %p271 = scmp.eq.s32.totalorder %s23, 7
    %p272 = por %p270, %p271
    %p273 = scmp.ne.s32.totalorder %s264, %s265
    %p274 = scmp.eq.s32.totalorder %s23, 0
    %p275 = por %p273, %p274
    %p276 = scmp.ne.s32.totalorder %s264, %s265
    %p277 = scmp.eq.s32.totalorder %s24, 7
    %p278 = por %p276, %p277
    %p280 = scmp.ne.s32.totalorder %s265, %s279
    %p281 = scmp.eq.s32.totalorder %s24, 0
    %p282 = por %p280, %p281
    %s283 = ssub.s32 %s18, %s25
    %p284 = scmp.eq.s32.totalorder %s283, 0
    %s286 = sadd.s32 %s285, 1
    %s287 = scalar_select %p284, %s285, %s286
    %p290 = pneg %p284
    %p291 = scmp.eq.s32.totalorder %s18, 7
    %p292 = por %p290, %p291
    %p293 = scmp.ne.s32.totalorder %s285, %s288
    %p294 = scmp.eq.s32.totalorder %s18, 0
    %p295 = por %p293, %p294
    %p296 = scmp.ne.s32.totalorder %s285, %s288
    %p297 = scmp.eq.s32.totalorder %s23, 7
    %p298 = por %p296, %p297
    %p299 = scmp.ne.s32.totalorder %s288, %s289
    %p300 = scmp.eq.s32.totalorder %s23, 0
    %p301 = por %p299, %p300
    %p302 = scmp.ne.s32.totalorder %s288, %s289
    %p303 = scmp.eq.s32.totalorder %s24, 7
    %p304 = por %p302, %p303
    %p306 = scmp.ne.s32.totalorder %s289, %s305
    %p307 = scmp.eq.s32.totalorder %s24, 0
    %p308 = por %p306, %p307
    %p309 = scmp.le.s32.totalorder 1, %s18
    %p310 = scmp.lt.s32.totalorder %s18, 9
    %p311 = pnand %p309, %p310
    %p312 = pneg %p311
    // Predicated region
    $region9: #{tpu_custom_call.1} parent=5 // pred_check
      _
    $region10: #{tpu_custom_call.1} parent=5 // pred_check_branch
      %314 = sbr.rel (%p311) target = $region12
    $region11: #{tpu_custom_call.1} parent=5 // pred_region
      %s315 = ssub.s32 %s18, 1
      // Predicated region
      $region13: #{tpu_custom_call.1} parent=11 // pred_check
        %p316 = pneg %p65
      $region14: #{tpu_custom_call.1} parent=11 // pred_check_branch
        %318 = sbr.rel (%p316) target = $region16
      $region15: #{tpu_custom_call.1} parent=11 // pred_region
        _
      $region16: #{tpu_custom_call.1} parent=11 // pred_fallthru
        _
      // Predicated region
      $region17: #{tpu_custom_call.1} parent=11 // pred_check
        %p319 = pneg %p86
      $region18: #{tpu_custom_call.1} parent=11 // pred_check_branch
        %321 = sbr.rel (%p319) target = $region20
      $region19: #{tpu_custom_call.1} parent=11 // pred_region
        _
      $region20: #{tpu_custom_call.1} parent=11 // pred_fallthru
        _
      // Predicated region
      $region21: #{tpu_custom_call.1} parent=11 // pred_check
        %p322 = pneg %p107
      $region22: #{tpu_custom_call.1} parent=11 // pred_check_branch
        %324 = sbr.rel (%p322) target = $region24
      $region23: #{tpu_custom_call.1} parent=11 // pred_region
        _
      $region24: #{tpu_custom_call.1} parent=11 // pred_fallthru
        _
      // Predicated region
      $region25: #{tpu_custom_call.1} parent=11 // pred_check
        %p325 = pneg %p128
      $region26: #{tpu_custom_call.1} parent=11 // pred_check_branch
        %327 = sbr.rel (%p325) target = $region28
      $region27: #{tpu_custom_call.1} parent=11 // pred_region
        _
      $region28: #{tpu_custom_call.1} parent=11 // pred_fallthru
        _
      // Predicated region
      $region29: #{tpu_custom_call.1} parent=11 // pred_check
        %p328 = pneg %p149
      $region30: #{tpu_custom_call.1} parent=11 // pred_check_branch
        %330 = sbr.rel (%p328) target = $region32
      $region31: #{tpu_custom_call.1} parent=11 // pred_region
        _
      $region32: #{tpu_custom_call.1} parent=11 // pred_fallthru
        _
      // Predicated region
      $region33: #{tpu_custom_call.1} parent=11 // pred_check
        %p331 = pneg %p170
      $region34: #{tpu_custom_call.1} parent=11 // pred_check_branch
        %333 = sbr.rel (%p331) target = $region36
      $region35: #{tpu_custom_call.1} parent=11 // pred_region
        _
      $region36: #{tpu_custom_call.1} parent=11 // pred_fallthru
        _
      // Predicated region
      $region37: #{tpu_custom_call.1} parent=11 // pred_check
        %p334 = pneg %p191
      $region38: #{tpu_custom_call.1} parent=11 // pred_check_branch
        %336 = sbr.rel (%p334) target = $region40
      $region39: #{tpu_custom_call.1} parent=11 // pred_region
        _
      $region40: #{tpu_custom_call.1} parent=11 // pred_fallthru
        _
      // Predicated region
      $region41: #{tpu_custom_call.1} parent=11 // pred_check
        %p337 = pneg %p212
      $region42: #{tpu_custom_call.1} parent=11 // pred_check_branch
        %339 = sbr.rel (%p337) target = $region44
      $region43: #{tpu_custom_call.1} parent=11 // pred_region
        _
      $region44: #{tpu_custom_call.1} parent=11 // pred_fallthru
        _
      // Predicated region
      $region45: #{tpu_custom_call.1} parent=11 // pred_check
        %p340 = pneg %p233
      $region46: #{tpu_custom_call.1} parent=11 // pred_check_branch
        %342 = sbr.rel (%p340) target = $region48
      $region47: #{tpu_custom_call.1} parent=11 // pred_region
        _
      $region48: #{tpu_custom_call.1} parent=11 // pred_fallthru
        _
      // Predicated region
      $region49: #{tpu_custom_call.1} parent=11 // pred_check
        %p343 = pneg %p254
      $region50: #{tpu_custom_call.1} parent=11 // pred_check_branch
        %345 = sbr.rel (%p343) target = $region52
      $region51: #{tpu_custom_call.1} parent=11 // pred_region
        _
      $region52: #{tpu_custom_call.1} parent=11 // pred_fallthru
        _
      // Predicated region
      $region53: #{tpu_custom_call.1} parent=11 // pred_check
        %p346 = pneg %p275
      $region54: #{tpu_custom_call.1} parent=11 // pred_check_branch
        %348 = sbr.rel (%p346) target = $region56
      $region55: #{tpu_custom_call.1} parent=11 // pred_region
        _
      $region56: #{tpu_custom_call.1} parent=11 // pred_fallthru
        _
    $region12: #{tpu_custom_call.1} parent=5 // pred_fallthru
      _
    %p349 = scmp.lt.s32.totalorder %s18, 8
    // Predicated region
    $region57: #{tpu_custom_call.1} parent=5 // pred_check
      %p350 = pneg %p349
    $region58: #{tpu_custom_call.1} parent=5 // pred_check_branch
      %352 = sbr.rel (%p350) target = $region60
    $region59: #{tpu_custom_call.1} parent=5 // pred_region
      // Predicated region
      $region61: #{tpu_custom_call.1} parent=59 // pred_check
        %p353 = pneg %p38
      $region62: #{tpu_custom_call.1} parent=59 // pred_check_branch
        %355 = sbr.rel (%p353) target = $region64
      $region63: #{tpu_custom_call.1} parent=59 // pred_region
        %s356 = smul.u32 32, %s18
        %p357 = scmp.lt.s32.totalorder %s356, 255
        %s358 = scalar_select %p357, %s356, 255
        %s359 = smul.addr %s358, 4
        %s360 = scalar_lea.vmem %s0, %s359
        %s361 = smul.u32 32, %s18
      $region64: #{tpu_custom_call.1} parent=59 // pred_fallthru
        _
    $region60: #{tpu_custom_call.1} parent=5 // pred_fallthru
      _
    %p362 = scmp.le.s32.totalorder 1, %s18
    %p363 = scmp.lt.s32.totalorder %s18, 9
    %p364 = pnand %p362, %p363
    %p365 = pneg %p364
    // Predicated region
    $region65: #{tpu_custom_call.1} parent=5 // pred_check
      _
    $region66: #{tpu_custom_call.1} parent=5 // pred_check_branch
      %367 = sbr.rel (%p364) target = $region68
    $region67: #{tpu_custom_call.1} parent=5 // pred_region
      %s368 = ssub.s32 %s18, 1
      %s369 = smul.u32 32, %s23
      %p370 = scmp.lt.s32.totalorder %s369, 255
      %s371 = scalar_select %p370, %s369, 255
      %s372 = smul.addr %s371, 4
      %s373 = scalar_lea.vmem %s0, %s372
      %p374 = pneg %p44
      %p375 = pneg %p41
      %p376 = pneg %p65
      %p377 = pneg %p62
      %p378 = pneg %p86
      %p379 = pneg %p83
      %p380 = pneg %p107
      %p381 = pneg %p104
      %p382 = pneg %p128
      %p383 = pneg %p125
      %p384 = pneg %p149
      %p385 = pneg %p146
      %p386 = pneg %p170
      %p387 = pneg %p167
      %p388 = pneg %p191
      %p389 = pneg %p188
      %p390 = pneg %p212
      %p391 = pneg %p209
      %p392 = pneg %p233
      %p393 = pneg %p230
      %p394 = pneg %p254
      %p395 = pneg %p251
      %p396 = pneg %p275
      %p397 = pneg %p272
      %p398 = pneg %p301
      %p399 = pneg %p298
      %s400 = smul.u32 32, %s23
      %p401 = scmp.lt.s32.totalorder %s400, 255
      %s402 = scalar_select %p401, %s400, 255
      %s403 = smul.addr %s402, 8
      %s404 = scalar_lea.vmem %s12, %s403
      %s405 = smul.u32 32, %s23
      %p406 = scmp.lt.s32.totalorder %s405, 255
      %s407 = scalar_select %p406, %s405, 255
      %s408 = smul.addr %s407, 4
      %s409 = scalar_lea.vmem %s0, %s408
      %s410 = smul.u32 32, %s23
      %s411 = smul.u32 32, %s23
      %p412 = scmp.lt.s32.totalorder %s411, 255
      %s413 = scalar_select %p412, %s411, 255
      %s414 = smul.addr %s413, 8
      %s415 = scalar_lea.vmem %s12, %s414
      %s416 = smul.u32 32, %s23
      %v418 = vld [vmem:[%s409] sm:$0xf]
      %v419 = vld [vmem:[%s409 + $0x4] sm:$0xf]
      %v420 = vld [vmem:[%s409 + $0x8] sm:$0xf]
      %v421 = vld [vmem:[%s409 + $0xc] sm:$0xf]
      %v422 = vld [vmem:[%s409 + $0x10] sm:$0xf]
      %v423 = vld [vmem:[%s409 + $0x14] sm:$0xf]
      %v424 = vld [vmem:[%s409 + $0x18] sm:$0xf]
      %v425 = vld [vmem:[%s409 + $0x1c] sm:$0xf]
      %v426 = vld [vmem:[%s409 + $0x20] sm:$0xf]
      %v427 = vld [vmem:[%s409 + $0x24] sm:$0xf]
      %v428 = vld [vmem:[%s409 + $0x28] sm:$0xf]
      %v429 = vld [vmem:[%s409 + $0x2c] sm:$0xf]
      %v430 = vld [vmem:[%s409 + $0x30] sm:$0xf]
      %v431 = vld [vmem:[%s409 + $0x34] sm:$0xf]
      %v432 = vld [vmem:[%s409 + $0x38] sm:$0xf]
      %v433 = vld [vmem:[%s409 + $0x3c] sm:$0xf]
      %v434 = vld [vmem:[%s409 + $0x40] sm:$0xf]
      %v435 = vld [vmem:[%s409 + $0x44] sm:$0xf]
      %v436 = vld [vmem:[%s409 + $0x48] sm:$0xf]
      %v437 = vld [vmem:[%s409 + $0x4c] sm:$0xf]
      %v438 = vld [vmem:[%s409 + $0x50] sm:$0xf]
      %v439 = vld [vmem:[%s409 + $0x54] sm:$0xf]
      %v440 = vld [vmem:[%s409 + $0x58] sm:$0xf]
      %v441 = vld [vmem:[%s409 + $0x5c] sm:$0xf]
      %v442 = vld [vmem:[%s409 + $0x60] sm:$0xf]
      %v443 = vld [vmem:[%s409 + $0x64] sm:$0xf]
      %v444 = vld [vmem:[%s409 + $0x68] sm:$0xf]
      %v445 = vld [vmem:[%s409 + $0x6c] sm:$0xf]
      %v446 = vld [vmem:[%s409 + $0x70] sm:$0xf]
      %v447 = vld [vmem:[%s409 + $0x74] sm:$0xf]
      %v448 = vld [vmem:[%s409 + $0x78] sm:$0xf]
      %v449 = vld [vmem:[%s409 + $0x7c] sm:$0xf]
      %v450 = vld [vmem:[%s1] sm:$0xf]
      %v451 = vld [vmem:[%s1 + $0x4] sm:$0xf]
      %v452 = vld [vmem:[%s1 + $0x8] sm:$0xf]
      %v453 = vld [vmem:[%s1 + $0xc] sm:$0xf]
      %v454 = vld [vmem:[%s1 + $0x10] sm:$0xf]
      %v455 = vld [vmem:[%s2] sm:$0x1]
      %v457 = vlaneseq
      %v458 = vshrl.u32 %v457, 7
      %v459 = vsub.s32 0, %v458
      %v460 = vrot.slane %v455, %v459
      %v494 = vunpack.c.l.b16 %v418
      %v495 = vunpack.c.l.b16 %v419
      %v496 = vunpack.c.l.b16 %v420
      %v497 = vunpack.c.l.b16 %v421
      %v498 = vunpack.c.l.b16 %v422
      %v499 = vunpack.c.l.b16 %v423
      %v500 = vunpack.c.l.b16 %v424
      %v501 = vunpack.c.l.b16 %v425
      %v502 = vunpack.c.l.b16 %v426
      %v503 = vunpack.c.l.b16 %v427
      %v504 = vunpack.c.l.b16 %v428
      %v505 = vunpack.c.l.b16 %v429
      %v506 = vunpack.c.l.b16 %v430
      %v507 = vunpack.c.l.b16 %v431
      %v508 = vunpack.c.l.b16 %v432
      %v509 = vunpack.c.l.b16 %v433
      %v510 = vunpack.c.l.b16 %v434
      %v511 = vunpack.c.l.b16 %v435
      %v512 = vunpack.c.l.b16 %v436
      %v513 = vunpack.c.l.b16 %v437
      %v514 = vunpack.c.l.b16 %v438
      %v515 = vunpack.c.l.b16 %v439
      %v516 = vunpack.c.l.b16 %v440
      %v517 = vunpack.c.l.b16 %v441
      %v518 = vunpack.c.l.b16 %v442
      %v519 = vunpack.c.l.b16 %v443
      %v520 = vunpack.c.l.b16 %v444
      %v521 = vunpack.c.l.b16 %v445
      %v522 = vunpack.c.l.b16 %v446
      %v523 = vunpack.c.l.b16 %v447
      %v524 = vunpack.c.l.b16 %v448
      %v525 = vunpack.c.l.b16 %v449
      %v526 = vpack.c.b16 %v495, %v494
      %v527 = vpack.c.b16 %v497, %v496
      %v528 = vpack.c.b16 %v499, %v498
      %v529 = vpack.c.b16 %v501, %v500
      %v530 = vpack.c.b16 %v503, %v502
      %v531 = vpack.c.b16 %v505, %v504
      %v532 = vpack.c.b16 %v507, %v506
      %v533 = vpack.c.b16 %v509, %v508
      %v534 = vpack.c.b16 %v511, %v510
      %v535 = vpack.c.b16 %v513, %v512
      %v536 = vpack.c.b16 %v515, %v514
      %v537 = vpack.c.b16 %v517, %v516
      %v538 = vpack.c.b16 %v519, %v518
      %v539 = vpack.c.b16 %v521, %v520
      %v540 = vpack.c.b16 %v523, %v522
      %v541 = vpack.c.b16 %v525, %v524
      %v547 = vunpack.c.l.b16 %v450
      %v548 = vunpack.c.l.b16 %v451
      %v549 = vunpack.c.l.b16 %v452
      %v550 = vunpack.c.l.b16 %v453
      %v551 = vunpack.c.l.b16 %v454
      %v552 = vpack.c.b16 %v548, %v547
      %v553 = vpack.c.b16 %v550, %v549
      %v554 = vpack.c.b16 %v551, %v551
      %vm557 = vcmask 318464
      %v559 = vsel %vm557, %v526, 0
      %v562 = vsel %vm557, %v527, 0
      %v565 = vsel %vm557, %v528, 0
      %v568 = vsel %vm557, %v529, 0
      %v571 = vsel %vm557, %v530, 0
      %v574 = vsel %vm557, %v531, 0
      %v577 = vsel %vm557, %v532, 0
      %v580 = vsel %vm557, %v533, 0
      %v583 = vsel %vm557, %v534, 0
      %v586 = vsel %vm557, %v535, 0
      %v589 = vsel %vm557, %v536, 0
      %v592 = vsel %vm557, %v537, 0
      %v595 = vsel %vm557, %v538, 0
      %v598 = vsel %vm557, %v539, 0
      %v601 = vsel %vm557, %v540, 0
      %v604 = vsel %vm557, %v541, 0
      %vm606 = vcmask 1042432
      %vm607 = vcmask 1043456
      %v608 = vsel %vm606, 4294967295, 65535
      %v609 = vsel %vm607, %v608, 0
      %v611 = vand.u32 %v554, %v609
      %613 = vmatprep.subr.bf16.mxu0 0
      %614 = vmatpush1.bf16.msra.mxu0 %v552
      %615 = vmatprep.subr.bf16.mxu0 0
      %616 = vmatpush1.bf16.msra.mxu0 %v553
      %617 = vmatprep.subr.bf16.mxu0 0
      %618 = vmatpush1.bf16.msra.mxu0 %v611
      %619 = vmatprep.subr.bf16.mxu0 0
      %620 = vmatpush1.bf16.msra.mxu0 0
      %621 = vmatprep.subr.bf16.mxu0 0
      %622 = vmatpush1.bf16.msra.mxu0 0
      %623 = vmatprep.subr.bf16.mxu0 0
      %624 = vmatpush1.bf16.msra.mxu0 0
      %625 = vmatprep.subr.bf16.mxu0 0
      %626 = vmatpush1.bf16.msra.mxu0 0
      %627 = vmatprep.subr.bf16.mxu0 0
      %628 = vmatpush1.bf16.msra.mxu0 0
      %629 = vmatprep.subr.bf16.mxu0 0
      %630 = vmatpush1.bf16.msra.mxu0 0
      %631 = vmatprep.subr.bf16.mxu0 0
      %632 = vmatpush1.bf16.msra.mxu0 0
      %633 = vmatprep.subr.bf16.mxu0 0
      %634 = vmatpush1.bf16.msra.mxu0 0
      %635 = vmatprep.subr.bf16.mxu0 0
      %636 = vmatpush1.bf16.msra.mxu0 0
      %637 = vmatprep.subr.bf16.mxu0 0
      %638 = vmatpush1.bf16.msra.mxu0 0
      %639 = vmatprep.subr.bf16.mxu0 0
      %640 = vmatpush1.bf16.msra.mxu0 0
      %641 = vmatprep.subr.bf16.mxu0 0
      %642 = vmatpush1.bf16.msra.mxu0 0
      %643 = vmatprep.subr.bf16.mxu0 0
      %644 = vmatpush1.bf16.msra.mxu0 0
      %645 = vmatprep.mubr.bf16.mxu0 0
      %646 = vmatmul.mubr.bf16.gmra.mrb[0].mxu0 %v559
      %v647 = vpop.f32.mrb[0].mxu0
      %v648 = vadd.f32 %v460, %v647
      %v649 = vpop.f32.mrb[0].mxu0
      %v650 = vpop.f32.mrb[0].mxu0
      %v651 = vadd.f32 %v460, %v650
      %v652 = vpop.f32.mrb[0].mxu0
      %653 = vmatprep.mubr.bf16.mxu0 0
      %654 = vmatmul.mubr.bf16.gmra.mrb[0].mxu0 %v562
      %v655 = vpop.f32.mrb[0].mxu0
      %v656 = vadd.f32 %v460, %v655
      %v657 = vpop.f32.mrb[0].mxu0
      %v658 = vpop.f32.mrb[0].mxu0
      %v659 = vadd.f32 %v460, %v658
      %v660 = vpop.f32.mrb[0].mxu0
      %661 = vmatprep.mubr.bf16.mxu0 0
      %662 = vmatmul.mubr.bf16.gmra.mrb[0].mxu0 %v565
      %v663 = vpop.f32.mrb[0].mxu0
      %v664 = vadd.f32 %v460, %v663
      %v665 = vpop.f32.mrb[0].mxu0
      %v666 = vpop.f32.mrb[0].mxu0
      %v667 = vadd.f32 %v460, %v666
      %v668 = vpop.f32.mrb[0].mxu0
      %669 = vmatprep.mubr.bf16.mxu0 0
      %670 = vmatmul.mubr.bf16.gmra.mrb[0].mxu0 %v568
      %v671 = vpop.f32.mrb[0].mxu0
      %v672 = vadd.f32 %v460, %v671
      %v673 = vpop.f32.mrb[0].mxu0
      %v674 = vpop.f32.mrb[0].mxu0
      %v675 = vadd.f32 %v460, %v674
      %v676 = vpop.f32.mrb[0].mxu0
      %677 = vmatprep.mubr.bf16.mxu0 0
      %678 = vmatmul.mubr.bf16.gmra.mrb[0].mxu0 %v571
      %v679 = vpop.f32.mrb[0].mxu0
      %v680 = vadd.f32 %v460, %v679
      %v681 = vpop.f32.mrb[0].mxu0
      %v682 = vpop.f32.mrb[0].mxu0
      %v683 = vadd.f32 %v460, %v682
      %v684 = vpop.f32.mrb[0].mxu0
      %685 = vmatprep.mubr.bf16.mxu0 0
      %686 = vmatmul.mubr.bf16.gmra.mrb[0].mxu0 %v574
      %v687 = vpop.f32.mrb[0].mxu0
      %v688 = vadd.f32 %v460, %v687
      %v689 = vpop.f32.mrb[0].mxu0
      %v690 = vpop.f32.mrb[0].mxu0
      %v691 = vadd.f32 %v460, %v690
      %v692 = vpop.f32.mrb[0].mxu0
      %693 = vmatprep.mubr.bf16.mxu0 0
      %694 = vmatmul.mubr.bf16.gmra.mrb[0].mxu0 %v577
      %v695 = vpop.f32.mrb[0].mxu0
      %v696 = vadd.f32 %v460, %v695
      %v697 = vpop.f32.mrb[0].mxu0
      %v698 = vpop.f32.mrb[0].mxu0
      %v699 = vadd.f32 %v460, %v698
      %v700 = vpop.f32.mrb[0].mxu0
      %701 = vmatprep.mubr.bf16.mxu0 0
      %702 = vmatmul.mubr.bf16.gmra.mrb[0].mxu0 %v580
      %v703 = vpop.f32.mrb[0].mxu0
      %v704 = vadd.f32 %v460, %v703
      %v705 = vpop.f32.mrb[0].mxu0
      %v706 = vpop.f32.mrb[0].mxu0
      %v707 = vadd.f32 %v460, %v706
      %v708 = vpop.f32.mrb[0].mxu0
      %709 = vmatprep.mubr.bf16.mxu0 0
      %710 = vmatmul.mubr.bf16.gmra.mrb[0].mxu0 %v583
      %v711 = vpop.f32.mrb[0].mxu0
      %v712 = vadd.f32 %v460, %v711
      %v713 = vpop.f32.mrb[0].mxu0
      %v714 = vpop.f32.mrb[0].mxu0
      %v715 = vadd.f32 %v460, %v714
      %v716 = vpop.f32.mrb[0].mxu0
      %717 = vmatprep.mubr.bf16.mxu0 0
      %718 = vmatmul.mubr.bf16.gmra.mrb[0].mxu0 %v586
      %v719 = vpop.f32.mrb[0].mxu0
      %v720 = vadd.f32 %v460, %v719
      %v721 = vpop.f32.mrb[0].mxu0
      %v722 = vpop.f32.mrb[0].mxu0
      %v723 = vadd.f32 %v460, %v722
      %v724 = vpop.f32.mrb[0].mxu0
      %725 = vmatprep.mubr.bf16.mxu0 0
      %726 = vmatmul.mubr.bf16.gmra.mrb[0].mxu0 %v589
      %v727 = vpop.f32.mrb[0].mxu0
      %v728 = vadd.f32 %v460, %v727
      %v729 = vpop.f32.mrb[0].mxu0
      %v730 = vpop.f32.mrb[0].mxu0
      %v731 = vadd.f32 %v460, %v730
      %v732 = vpop.f32.mrb[0].mxu0
      %733 = vmatprep.mubr.bf16.mxu0 0
      %734 = vmatmul.mubr.bf16.gmra.mrb[0].mxu0 %v592
      %v735 = vpop.f32.mrb[0].mxu0
      %v736 = vadd.f32 %v460, %v735
      %v737 = vpop.f32.mrb[0].mxu0
      %v738 = vpop.f32.mrb[0].mxu0
      %v739 = vadd.f32 %v460, %v738
      %v740 = vpop.f32.mrb[0].mxu0
      %741 = vmatprep.mubr.bf16.mxu0 0
      %742 = vmatmul.mubr.bf16.gmra.mrb[0].mxu0 %v595
      %v743 = vpop.f32.mrb[0].mxu0
      %v744 = vadd.f32 %v460, %v743
      %v745 = vpop.f32.mrb[0].mxu0
      %v746 = vpop.f32.mrb[0].mxu0
      %v747 = vadd.f32 %v460, %v746
      %v748 = vpop.f32.mrb[0].mxu0
      %749 = vmatprep.mubr.bf16.mxu0 0
      %750 = vmatmul.mubr.bf16.gmra.mrb[0].mxu0 %v598
      %v751 = vpop.f32.mrb[0].mxu0
      %v752 = vadd.f32 %v460, %v751
      %v753 = vpop.f32.mrb[0].mxu0
      %v754 = vpop.f32.mrb[0].mxu0
      %v755 = vadd.f32 %v460, %v754
      %v756 = vpop.f32.mrb[0].mxu0
      %757 = vmatprep.mubr.bf16.mxu0 0
      %758 = vmatmul.mubr.bf16.gmra.mrb[0].mxu0 %v601
      %v759 = vpop.f32.mrb[0].mxu0
      %v760 = vadd.f32 %v460, %v759
      %v761 = vpop.f32.mrb[0].mxu0
      %v762 = vpop.f32.mrb[0].mxu0
      %v763 = vadd.f32 %v460, %v762
      %v764 = vpop.f32.mrb[0].mxu0
      %765 = vmatprep.mubr.bf16.mxu0 0
      %766 = vmatmul.mubr.bf16.gmra.mrb[0].mxu0 %v604
      %v767 = vpop.f32.mrb[0].mxu0
      %v768 = vadd.f32 %v460, %v767
      %v769 = vpop.f32.mrb[0].mxu0
      %v770 = vpop.f32.mrb[0].mxu0
      %v771 = vadd.f32 %v460, %v770
      %v772 = vpop.f32.mrb[0].mxu0
      %773 = vdwg.mxu0
      %v774 = vpack.c.bf16 %v651, %v648
      %v775 = vpack.c.bf16 %v659, %v656
      %v776 = vpack.c.bf16 %v667, %v664
      %v777 = vpack.c.bf16 %v675, %v672
      %v778 = vpack.c.bf16 %v683, %v680
      %v779 = vpack.c.bf16 %v691, %v688
      %v780 = vpack.c.bf16 %v699, %v696
      %v781 = vpack.c.bf16 %v707, %v704
      %v782 = vpack.c.bf16 %v715, %v712
      %v783 = vpack.c.bf16 %v723, %v720
      %v784 = vpack.c.bf16 %v731, %v728
      %v785 = vpack.c.bf16 %v739, %v736
      %v786 = vpack.c.bf16 %v747, %v744
      %v787 = vpack.c.bf16 %v755, %v752
      %v788 = vpack.c.bf16 %v763, %v760
      %v789 = vpack.c.bf16 %v771, %v768
      %v790 = vld [vmem:[%s3] sm:$0xf]
      %v791 = vld [vmem:[%s3 + $0x4] sm:$0xf]
      %v792 = vld [vmem:[%s3 + $0x8] sm:$0xf]
      %v793 = vld [vmem:[%s3 + $0xc] sm:$0xf]
      %v794 = vld [vmem:[%s3 + $0x10] sm:$0xf]
      %v795 = vld [vmem:[%s3 + $0x14] sm:$0xf]
      %v796 = vld [vmem:[%s3 + $0x18] sm:$0xf]
      %v797 = vld [vmem:[%s3 + $0x1c] sm:$0xf]
      %v798 = vld [vmem:[%s3 + $0x20] sm:$0xf]
      %v799 = vld [vmem:[%s3 + $0x24] sm:$0xf]
      %v800 = vld [vmem:[%s3 + $0x28] sm:$0xf]
      %v801 = vld [vmem:[%s3 + $0x2c] sm:$0xf]
      %v802 = vld [vmem:[%s3 + $0x30] sm:$0xf]
      %v803 = vld [vmem:[%s3 + $0x34] sm:$0xf]
      %v804 = vld [vmem:[%s3 + $0x38] sm:$0xf]
      %v805 = vld [vmem:[%s3 + $0x3c] sm:$0xf]
      %v806 = vld [vmem:[%s4] sm:$0x1]
      %v807 = vlaneseq
      %v808 = vshrl.u32 %v807, 7
      %v809 = vsub.s32 0, %v808
      %v810 = vrot.slane %v806, %v809
      %v827 = vunpack.c.l.b16 %v790
      %v828 = vunpack.c.l.b16 %v791
      %v829 = vunpack.c.l.b16 %v792
      %v830 = vunpack.c.l.b16 %v793
      %v831 = vunpack.c.l.b16 %v794
      %v832 = vunpack.c.l.b16 %v795
      %v833 = vunpack.c.l.b16 %v796
      %v834 = vunpack.c.l.b16 %v797
      %v835 = vunpack.c.l.b16 %v798
      %v836 = vunpack.c.l.b16 %v799
      %v837 = vunpack.c.l.b16 %v800
      %v838 = vunpack.c.l.b16 %v801
      %v839 = vunpack.c.l.b16 %v802
      %v840 = vunpack.c.l.b16 %v803
      %v841 = vunpack.c.l.b16 %v804
      %v842 = vunpack.c.l.b16 %v805
      %v843 = vpack.c.b16 %v828, %v827
      %v844 = vpack.c.b16 %v830, %v829
      %v845 = vpack.c.b16 %v832, %v831
      %v846 = vpack.c.b16 %v834, %v833
      %v847 = vpack.c.b16 %v836, %v835
      %v848 = vpack.c.b16 %v838, %v837
      %v849 = vpack.c.b16 %v840, %v839
      %v850 = vpack.c.b16 %v842, %v841
      %859 = vmatprep.subr.bf16.mxu0 0
      %860 = vmatpush1.bf16.msra.mxu0 %v843
      %861 = vmatprep.subr.bf16.mxu0 0
      %862 = vmatpush1.bf16.msra.mxu0 %v844
      %863 = vmatprep.subr.bf16.mxu0 0
      %864 = vmatpush1.bf16.msra.mxu0 %v845
      %865 = vmatprep.subr.bf16.mxu0 0
      %866 = vmatpush1.bf16.msra.mxu0 %v846
      %867 = vmatprep.subr.bf16.mxu0 0
      %868 = vmatpush1.bf16.msra.mxu0 %v847
      %869 = vmatprep.subr.bf16.mxu0 0
      %870 = vmatpush1.bf16.msra.mxu0 %v848
      %871 = vmatprep.subr.bf16.mxu0 0
      %872 = vmatpush1.bf16.msra.mxu0 %v849
      %873 = vmatprep.subr.bf16.mxu0 0
      %874 = vmatpush1.bf16.msra.mxu0 %v850
      %875 = vmatprep.subr.bf16.mxu0 0
      %876 = vmatpush1.bf16.msra.mxu0 0
      %877 = vmatprep.subr.bf16.mxu0 0
      %878 = vmatpush1.bf16.msra.mxu0 0
      %879 = vmatprep.subr.bf16.mxu0 0
      %880 = vmatpush1.bf16.msra.mxu0 0
      %881 = vmatprep.subr.bf16.mxu0 0
      %882 = vmatpush1.bf16.msra.mxu0 0
      %883 = vmatprep.subr.bf16.mxu0 0
      %884 = vmatpush1.bf16.msra.mxu0 0
      %885 = vmatprep.subr.bf16.mxu0 0
      %886 = vmatpush1.bf16.msra.mxu0 0
      %887 = vmatprep.subr.bf16.mxu0 0
      %888 = vmatpush1.bf16.msra.mxu0 0
      %889 = vmatprep.subr.bf16.mxu0 0
      %890 = vmatpush1.bf16.msra.mxu0 0
      %891 = vmatprep.mubr.bf16.mxu0 0
      %892 = vmatmul.mubr.bf16.gmra.mrb[0].mxu0 %v774
      %v893 = vpop.f32.mrb[0].mxu0
      %v894 = vadd.f32 %v810, %v893
      %v895 = vpop.f32.mrb[0].mxu0
      %v896 = vpop.f32.mrb[0].mxu0
      %v897 = vadd.f32 %v810, %v896
      %v898 = vpop.f32.mrb[0].mxu0
      %899 = vmatprep.mubr.bf16.mxu0 0
      %900 = vmatmul.mubr.bf16.gmra.mrb[0].mxu0 %v775
      %v901 = vpop.f32.mrb[0].mxu0
      %v902 = vadd.f32 %v810, %v901
      %v903 = vpop.f32.mrb[0].mxu0
      %v904 = vpop.f32.mrb[0].mxu0
      %v905 = vadd.f32 %v810, %v904
      %v906 = vpop.f32.mrb[0].mxu0
      %907 = vmatprep.mubr.bf16.mxu0 0
      %908 = vmatmul.mubr.bf16.gmra.mrb[0].mxu0 %v776
      %v909 = vpop.f32.mrb[0].mxu0
      %v910 = vadd.f32 %v810, %v909
      %v911 = vpop.f32.mrb[0].mxu0
      %v912 = vpop.f32.mrb[0].mxu0
      %v913 = vadd.f32 %v810, %v912
      %v914 = vpop.f32.mrb[0].mxu0
      %915 = vmatprep.mubr.bf16.mxu0 0
      %916 = vmatmul.mubr.bf16.gmra.mrb[0].mxu0 %v777
      %v917 = vpop.f32.mrb[0].mxu0
      %v918 = vadd.f32 %v810, %v917
      %v919 = vpop.f32.mrb[0].mxu0
      %v920 = vpop.f32.mrb[0].mxu0
      %v921 = vadd.f32 %v810, %v920
      %v922 = vpop.f32.mrb[0].mxu0
      %923 = vmatprep.mubr.bf16.mxu0 0
      %924 = vmatmul.mubr.bf16.gmra.mrb[0].mxu0 %v778
      %v925 = vpop.f32.mrb[0].mxu0
      %v926 = vadd.f32 %v810, %v925
      %v927 = vpop.f32.mrb[0].mxu0
      %v928 = vpop.f32.mrb[0].mxu0
      %v929 = vadd.f32 %v810, %v928
      %v930 = vpop.f32.mrb[0].mxu0
      %931 = vmatprep.mubr.bf16.mxu0 0
      %932 = vmatmul.mubr.bf16.gmra.mrb[0].mxu0 %v779
      %v933 = vpop.f32.mrb[0].mxu0
      %v934 = vadd.f32 %v810, %v933
      %v935 = vpop.f32.mrb[0].mxu0
      %v936 = vpop.f32.mrb[0].mxu0
      %v937 = vadd.f32 %v810, %v936
      %v938 = vpop.f32.mrb[0].mxu0
      %939 = vmatprep.mubr.bf16.mxu0 0
      %940 = vmatmul.mubr.bf16.gmra.mrb[0].mxu0 %v780
      %v941 = vpop.f32.mrb[0].mxu0
      %v942 = vadd.f32 %v810, %v941
      %v943 = vpop.f32.mrb[0].mxu0
      %v944 = vpop.f32.mrb[0].mxu0
      %v945 = vadd.f32 %v810, %v944
      %v946 = vpop.f32.mrb[0].mxu0
      %947 = vmatprep.mubr.bf16.mxu0 0
      %948 = vmatmul.mubr.bf16.gmra.mrb[0].mxu0 %v781
      %v949 = vpop.f32.mrb[0].mxu0
      %v950 = vadd.f32 %v810, %v949
      %v951 = vpop.f32.mrb[0].mxu0
      %v952 = vpop.f32.mrb[0].mxu0
      %v953 = vadd.f32 %v810, %v952
      %v954 = vpop.f32.mrb[0].mxu0
      %955 = vmatprep.mubr.bf16.mxu0 0
      %956 = vmatmul.mubr.bf16.gmra.mrb[0].mxu0 %v782
      %v957 = vpop.f32.mrb[0].mxu0
      %v958 = vadd.f32 %v810, %v957
      %v959 = vpop.f32.mrb[0].mxu0
      %v960 = vpop.f32.mrb[0].mxu0
      %v961 = vadd.f32 %v810, %v960
      %v962 = vpop.f32.mrb[0].mxu0
      %963 = vmatprep.mubr.bf16.mxu0 0
      %964 = vmatmul.mubr.bf16.gmra.mrb[0].mxu0 %v783
      %v965 = vpop.f32.mrb[0].mxu0
      %v966 = vadd.f32 %v810, %v965
      %v967 = vpop.f32.mrb[0].mxu0
      %v968 = vpop.f32.mrb[0].mxu0
      %v969 = vadd.f32 %v810, %v968
      %v970 = vpop.f32.mrb[0].mxu0
      %971 = vmatprep.mubr.bf16.mxu0 0
      %972 = vmatmul.mubr.bf16.gmra.mrb[0].mxu0 %v784
      %v973 = vpop.f32.mrb[0].mxu0
      %v974 = vadd.f32 %v810, %v973
      %v975 = vpop.f32.mrb[0].mxu0
      %v976 = vpop.f32.mrb[0].mxu0
      %v977 = vadd.f32 %v810, %v976
      %v978 = vpop.f32.mrb[0].mxu0
      %979 = vmatprep.mubr.bf16.mxu0 0
      %980 = vmatmul.mubr.bf16.gmra.mrb[0].mxu0 %v785
      %v981 = vpop.f32.mrb[0].mxu0
      %v982 = vadd.f32 %v810, %v981
      %v983 = vpop.f32.mrb[0].mxu0
      %v984 = vpop.f32.mrb[0].mxu0
      %v985 = vadd.f32 %v810, %v984
      %v986 = vpop.f32.mrb[0].mxu0
      %987 = vmatprep.mubr.bf16.mxu0 0
      %988 = vmatmul.mubr.bf16.gmra.mrb[0].mxu0 %v786
      %v989 = vpop.f32.mrb[0].mxu0
      %v990 = vadd.f32 %v810, %v989
      %v991 = vpop.f32.mrb[0].mxu0
      %v992 = vpop.f32.mrb[0].mxu0
      %v993 = vadd.f32 %v810, %v992
      %v994 = vpop.f32.mrb[0].mxu0
      %995 = vmatprep.mubr.bf16.mxu0 0
      %996 = vmatmul.mubr.bf16.gmra.mrb[0].mxu0 %v787
      %v997 = vpop.f32.mrb[0].mxu0
      %v998 = vadd.f32 %v810, %v997
      %v999 = vpop.f32.mrb[0].mxu0
      %v1000 = vpop.f32.mrb[0].mxu0
      %v1001 = vadd.f32 %v810, %v1000
      %v1002 = vpop.f32.mrb[0].mxu0
      %1003 = vmatprep.mubr.bf16.mxu0 0
      %1004 = vmatmul.mubr.bf16.gmra.mrb[0].mxu0 %v788
      %v1005 = vpop.f32.mrb[0].mxu0
      %v1006 = vadd.f32 %v810, %v1005
      %v1007 = vpop.f32.mrb[0].mxu0
      %v1008 = vpop.f32.mrb[0].mxu0
      %v1009 = vadd.f32 %v810, %v1008
      %v1010 = vpop.f32.mrb[0].mxu0
      %1011 = vmatprep.mubr.bf16.mxu0 0
      %1012 = vmatmul.mubr.bf16.gmra.mrb[0].mxu0 %v789
      %v1013 = vpop.f32.mrb[0].mxu0
      %v1014 = vadd.f32 %v810, %v1013
      %v1015 = vpop.f32.mrb[0].mxu0
      %v1016 = vpop.f32.mrb[0].mxu0
      %v1017 = vadd.f32 %v810, %v1016
      %v1018 = vpop.f32.mrb[0].mxu0
      %1019 = vdwg.mxu0
      %v1020 = vmax.f32 %v894, 0.0
      %v1021 = vmax.f32 %v897, 0.0
      %v1022 = vmax.f32 %v902, 0.0
      %v1023 = vmax.f32 %v905, 0.0
      %v1024 = vmax.f32 %v910, 0.0
      %v1025 = vmax.f32 %v913, 0.0
      %v1026 = vmax.f32 %v918, 0.0
      %v1027 = vmax.f32 %v921, 0.0
      %v1028 = vmax.f32 %v926, 0.0
      %v1029 = vmax.f32 %v929, 0.0
      %v1030 = vmax.f32 %v934, 0.0
      %v1031 = vmax.f32 %v937, 0.0
      %v1032 = vmax.f32 %v942, 0.0
      %v1033 = vmax.f32 %v945, 0.0
      %v1034 = vmax.f32 %v950, 0.0
      %v1035 = vmax.f32 %v953, 0.0
      %v1036 = vmax.f32 %v958, 0.0
      %v1037 = vmax.f32 %v961, 0.0
      %v1038 = vmax.f32 %v966, 0.0
      %v1039 = vmax.f32 %v969, 0.0
      %v1040 = vmax.f32 %v974, 0.0
      %v1041 = vmax.f32 %v977, 0.0
      %v1042 = vmax.f32 %v982, 0.0
      %v1043 = vmax.f32 %v985, 0.0
      %v1044 = vmax.f32 %v990, 0.0
      %v1045 = vmax.f32 %v993, 0.0
      %v1046 = vmax.f32 %v998, 0.0
      %v1047 = vmax.f32 %v1001, 0.0
      %v1048 = vmax.f32 %v1006, 0.0
      %v1049 = vmax.f32 %v1009, 0.0
      %v1050 = vmax.f32 %v1014, 0.0
      %v1051 = vmax.f32 %v1017, 0.0
      %v1052 = vpack.c.bf16 %v1021, %v1020
      %v1053 = vpack.c.bf16 %v1023, %v1022
      %v1054 = vpack.c.bf16 %v1025, %v1024
      %v1055 = vpack.c.bf16 %v1027, %v1026
      %v1056 = vpack.c.bf16 %v1029, %v1028
      %v1057 = vpack.c.bf16 %v1031, %v1030
      %v1058 = vpack.c.bf16 %v1033, %v1032
      %v1059 = vpack.c.bf16 %v1035, %v1034
      %v1060 = vpack.c.bf16 %v1037, %v1036
      %v1061 = vpack.c.bf16 %v1039, %v1038
      %v1062 = vpack.c.bf16 %v1041, %v1040
      %v1063 = vpack.c.bf16 %v1043, %v1042
      %v1064 = vpack.c.bf16 %v1045, %v1044
      %v1065 = vpack.c.bf16 %v1047, %v1046
      %v1066 = vpack.c.bf16 %v1049, %v1048
      %v1067 = vpack.c.bf16 %v1051, %v1050
      %s1068 = scalar_lea.vmem %s3, 64
      %v1069 = vld [vmem:[%s1068] sm:$0xf]
      %v1070 = vld [vmem:[%s1068 + $0x4] sm:$0xf]
      %v1071 = vld [vmem:[%s1068 + $0x8] sm:$0xf]
      %v1072 = vld [vmem:[%s1068 + $0xc] sm:$0xf]
      %v1073 = vld [vmem:[%s1068 + $0x10] sm:$0xf]
      %v1074 = vld [vmem:[%s1068 + $0x14] sm:$0xf]
      %v1075 = vld [vmem:[%s1068 + $0x18] sm:$0xf]
      %v1076 = vld [vmem:[%s1068 + $0x1c] sm:$0xf]
      %v1077 = vld [vmem:[%s1068 + $0x20] sm:$0xf]
      %v1078 = vld [vmem:[%s1068 + $0x24] sm:$0xf]
      %v1079 = vld [vmem:[%s1068 + $0x28] sm:$0xf]
      %v1080 = vld [vmem:[%s1068 + $0x2c] sm:$0xf]
      %v1081 = vld [vmem:[%s1068 + $0x30] sm:$0xf]
      %v1082 = vld [vmem:[%s1068 + $0x34] sm:$0xf]
      %v1083 = vld [vmem:[%s1068 + $0x38] sm:$0xf]
      %v1084 = vld [vmem:[%s1068 + $0x3c] sm:$0xf]
      %v1085 = vld [vmem:[%s4 + $0x1] sm:$0x1]
      %v1086 = vlaneseq
      %v1087 = vshrl.u32 %v1086, 7
      %v1088 = vsub.s32 0, %v1087
      %v1089 = vrot.slane %v1085, %v1088
      %v1106 = vunpack.c.l.b16 %v1069
      %v1107 = vunpack.c.l.b16 %v1070
      %v1108 = vunpack.c.l.b16 %v1071
      %v1109 = vunpack.c.l.b16 %v1072
      %v1110 = vunpack.c.l.b16 %v1073
      %v1111 = vunpack.c.l.b16 %v1074
      %v1112 = vunpack.c.l.b16 %v1075
      %v1113 = vunpack.c.l.b16 %v1076
      %v1114 = vunpack.c.l.b16 %v1077
      %v1115 = vunpack.c.l.b16 %v1078
      %v1116 = vunpack.c.l.b16 %v1079
      %v1117 = vunpack.c.l.b16 %v1080
      %v1118 = vunpack.c.l.b16 %v1081
      %v1119 = vunpack.c.l.b16 %v1082
      %v1120 = vunpack.c.l.b16 %v1083
      %v1121 = vunpack.c.l.b16 %v1084
      %v1122 = vpack.c.b16 %v1107, %v1106
      %v1123 = vpack.c.b16 %v1109, %v1108
      %v1124 = vpack.c.b16 %v1111, %v1110
      %v1125 = vpack.c.b16 %v1113, %v1112
      %v1126 = vpack.c.b16 %v1115, %v1114
      %v1127 = vpack.c.b16 %v1117, %v1116
      %v1128 = vpack.c.b16 %v1119, %v1118
      %v1129 = vpack.c.b16 %v1121, %v1120
      %1138 = vmatprep.subr.bf16.mxu0 0
      %1139 = vmatpush1.bf16.msra.mxu0 %v1122
      %1140 = vmatprep.subr.bf16.mxu0 0
      %1141 = vmatpush1.bf16.msra.mxu0 %v1123
      %1142 = vmatprep.subr.bf16.mxu0 0
      %1143 = vmatpush1.bf16.msra.mxu0 %v1124
      %1144 = vmatprep.subr.bf16.mxu0 0
      %1145 = vmatpush1.bf16.msra.mxu0 %v1125
      %1146 = vmatprep.subr.bf16.mxu0 0
      %1147 = vmatpush1.bf16.msra.mxu0 %v1126
      %1148 = vmatprep.subr.bf16.mxu0 0
      %1149 = vmatpush1.bf16.msra.mxu0 %v1127
      %1150 = vmatprep.subr.bf16.mxu0 0
      %1151 = vmatpush1.bf16.msra.mxu0 %v1128
      %1152 = vmatprep.subr.bf16.mxu0 0
      %1153 = vmatpush1.bf16.msra.mxu0 %v1129
      %1154 = vmatprep.subr.bf16.mxu0 0
      %1155 = vmatpush1.bf16.msra.mxu0 0
      %1156 = vmatprep.subr.bf16.mxu0 0
      %1157 = vmatpush1.bf16.msra.mxu0 0
      %1158 = vmatprep.subr.bf16.mxu0 0
      %1159 = vmatpush1.bf16.msra.mxu0 0
      %1160 = vmatprep.subr.bf16.mxu0 0
      %1161 = vmatpush1.bf16.msra.mxu0 0
      %1162 = vmatprep.subr.bf16.mxu0 0
      %1163 = vmatpush1.bf16.msra.mxu0 0
      %1164 = vmatprep.subr.bf16.mxu0 0
      %1165 = vmatpush1.bf16.msra.mxu0 0
      %1166 = vmatprep.subr.bf16.mxu0 0
      %1167 = vmatpush1.bf16.msra.mxu0 0
      %1168 = vmatprep.subr.bf16.mxu0 0
      %1169 = vmatpush1.bf16.msra.mxu0 0
      %1170 = vmatprep.mubr.bf16.mxu0 0
      %1171 = vmatmul.mubr.bf16.gmra.mrb[0].mxu0 %v1052
      %v1172 = vpop.f32.mrb[0].mxu0
      %v1173 = vadd.f32 %v1089, %v1172
      %v1174 = vpop.f32.mrb[0].mxu0
      %v1175 = vpop.f32.mrb[0].mxu0
      %v1176 = vadd.f32 %v1089, %v1175
      %v1177 = vpop.f32.mrb[0].mxu0
      %1178 = vmatprep.mubr.bf16.mxu0 0
      %1179 = vmatmul.mubr.bf16.gmra.mrb[0].mxu0 %v1053
      %v1180 = vpop.f32.mrb[0].mxu0
      %v1181 = vadd.f32 %v1089, %v1180
      %v1182 = vpop.f32.mrb[0].mxu0
      %v1183 = vpop.f32.mrb[0].mxu0
      %v1184 = vadd.f32 %v1089, %v1183
      %v1185 = vpop.f32.mrb[0].mxu0
      %1186 = vmatprep.mubr.bf16.mxu0 0
      %1187 = vmatmul.mubr.bf16.gmra.mrb[0].mxu0 %v1054
      %v1188 = vpop.f32.mrb[0].mxu0
      %v1189 = vadd.f32 %v1089, %v1188
      %v1190 = vpop.f32.mrb[0].mxu0
      %v1191 = vpop.f32.mrb[0].mxu0
      %v1192 = vadd.f32 %v1089, %v1191
      %v1193 = vpop.f32.mrb[0].mxu0
      %1194 = vmatprep.mubr.bf16.mxu0 0
      %1195 = vmatmul.mubr.bf16.gmra.mrb[0].mxu0 %v1055
      %v1196 = vpop.f32.mrb[0].mxu0
      %v1197 = vadd.f32 %v1089, %v1196
      %v1198 = vpop.f32.mrb[0].mxu0
      %v1199 = vpop.f32.mrb[0].mxu0
      %v1200 = vadd.f32 %v1089, %v1199
      %v1201 = vpop.f32.mrb[0].mxu0
      %1202 = vmatprep.mubr.bf16.mxu0 0
      %1203 = vmatmul.mubr.bf16.gmra.mrb[0].mxu0 %v1056
      %v1204 = vpop.f32.mrb[0].mxu0
      %v1205 = vadd.f32 %v1089, %v1204
      %v1206 = vpop.f32.mrb[0].mxu0
      %v1207 = vpop.f32.mrb[0].mxu0
      %v1208 = vadd.f32 %v1089, %v1207
      %v1209 = vpop.f32.mrb[0].mxu0
      %1210 = vmatprep.mubr.bf16.mxu0 0
      %1211 = vmatmul.mubr.bf16.gmra.mrb[0].mxu0 %v1057
      %v1212 = vpop.f32.mrb[0].mxu0
      %v1213 = vadd.f32 %v1089, %v1212
      %v1214 = vpop.f32.mrb[0].mxu0
      %v1215 = vpop.f32.mrb[0].mxu0
      %v1216 = vadd.f32 %v1089, %v1215
      %v1217 = vpop.f32.mrb[0].mxu0
      %1218 = vmatprep.mubr.bf16.mxu0 0
      %1219 = vmatmul.mubr.bf16.gmra.mrb[0].mxu0 %v1058
      %v1220 = vpop.f32.mrb[0].mxu0
      %v1221 = vadd.f32 %v1089, %v1220
      %v1222 = vpop.f32.mrb[0].mxu0
      %v1223 = vpop.f32.mrb[0].mxu0
      %v1224 = vadd.f32 %v1089, %v1223
      %v1225 = vpop.f32.mrb[0].mxu0
      %1226 = vmatprep.mubr.bf16.mxu0 0
      %1227 = vmatmul.mubr.bf16.gmra.mrb[0].mxu0 %v1059
      %v1228 = vpop.f32.mrb[0].mxu0
      %v1229 = vadd.f32 %v1089, %v1228
      %v1230 = vpop.f32.mrb[0].mxu0
      %v1231 = vpop.f32.mrb[0].mxu0
      %v1232 = vadd.f32 %v1089, %v1231
      %v1233 = vpop.f32.mrb[0].mxu0
      %1234 = vmatprep.mubr.bf16.mxu0 0
      %1235 = vmatmul.mubr.bf16.gmra.mrb[0].mxu0 %v1060
      %v1236 = vpop.f32.mrb[0].mxu0
      %v1237 = vadd.f32 %v1089, %v1236
      %v1238 = vpop.f32.mrb[0].mxu0
      %v1239 = vpop.f32.mrb[0].mxu0
      %v1240 = vadd.f32 %v1089, %v1239
      %v1241 = vpop.f32.mrb[0].mxu0
      %1242 = vmatprep.mubr.bf16.mxu0 0
      %1243 = vmatmul.mubr.bf16.gmra.mrb[0].mxu0 %v1061
      %v1244 = vpop.f32.mrb[0].mxu0
      %v1245 = vadd.f32 %v1089, %v1244
      %v1246 = vpop.f32.mrb[0].mxu0
      %v1247 = vpop.f32.mrb[0].mxu0
      %v1248 = vadd.f32 %v1089, %v1247
      %v1249 = vpop.f32.mrb[0].mxu0
      %1250 = vmatprep.mubr.bf16.mxu0 0
      %1251 = vmatmul.mubr.bf16.gmra.mrb[0].mxu0 %v1062
      %v1252 = vpop.f32.mrb[0].mxu0
      %v1253 = vadd.f32 %v1089, %v1252
      %v1254 = vpop.f32.mrb[0].mxu0
      %v1255 = vpop.f32.mrb[0].mxu0
      %v1256 = vadd.f32 %v1089, %v1255
      %v1257 = vpop.f32.mrb[0].mxu0
      %1258 = vmatprep.mubr.bf16.mxu0 0
      %1259 = vmatmul.mubr.bf16.gmra.mrb[0].mxu0 %v1063
      %v1260 = vpop.f32.mrb[0].mxu0
      %v1261 = vadd.f32 %v1089, %v1260
      %v1262 = vpop.f32.mrb[0].mxu0
      %v1263 = vpop.f32.mrb[0].mxu0
      %v1264 = vadd.f32 %v1089, %v1263
      %v1265 = vpop.f32.mrb[0].mxu0
      %1266 = vmatprep.mubr.bf16.mxu0 0
      %1267 = vmatmul.mubr.bf16.gmra.mrb[0].mxu0 %v1064
      %v1268 = vpop.f32.mrb[0].mxu0
      %v1269 = vadd.f32 %v1089, %v1268
      %v1270 = vpop.f32.mrb[0].mxu0
      %v1271 = vpop.f32.mrb[0].mxu0
      %v1272 = vadd.f32 %v1089, %v1271
      %v1273 = vpop.f32.mrb[0].mxu0
      %1274 = vmatprep.mubr.bf16.mxu0 0
      %1275 = vmatmul.mubr.bf16.gmra.mrb[0].mxu0 %v1065
      %v1276 = vpop.f32.mrb[0].mxu0
      %v1277 = vadd.f32 %v1089, %v1276
      %v1278 = vpop.f32.mrb[0].mxu0
      %v1279 = vpop.f32.mrb[0].mxu0
      %v1280 = vadd.f32 %v1089, %v1279
      %v1281 = vpop.f32.mrb[0].mxu0
      %1282 = vmatprep.mubr.bf16.mxu0 0
      %1283 = vmatmul.mubr.bf16.gmra.mrb[0].mxu0 %v1066
      %v1284 = vpop.f32.mrb[0].mxu0
      %v1285 = vadd.f32 %v1089, %v1284
      %v1286 = vpop.f32.mrb[0].mxu0
      %v1287 = vpop.f32.mrb[0].mxu0
      %v1288 = vadd.f32 %v1089, %v1287
      %v1289 = vpop.f32.mrb[0].mxu0
      %1290 = vmatprep.mubr.bf16.mxu0 0
      %1291 = vmatmul.mubr.bf16.gmra.mrb[0].mxu0 %v1067
      %v1292 = vpop.f32.mrb[0].mxu0
      %v1293 = vadd.f32 %v1089, %v1292
      %v1294 = vpop.f32.mrb[0].mxu0
      %v1295 = vpop.f32.mrb[0].mxu0
      %v1296 = vadd.f32 %v1089, %v1295
      %v1297 = vpop.f32.mrb[0].mxu0
      %1298 = vdwg.mxu0
      %v1299 = vmax.f32 %v1173, 0.0
      %v1300 = vmax.f32 %v1176, 0.0
      %v1301 = vmax.f32 %v1181, 0.0
      %v1302 = vmax.f32 %v1184, 0.0
      %v1303 = vmax.f32 %v1189, 0.0
      %v1304 = vmax.f32 %v1192, 0.0
      %v1305 = vmax.f32 %v1197, 0.0
      %v1306 = vmax.f32 %v1200, 0.0
      %v1307 = vmax.f32 %v1205, 0.0
      %v1308 = vmax.f32 %v1208, 0.0
      %v1309 = vmax.f32 %v1213, 0.0
      %v1310 = vmax.f32 %v1216, 0.0
      %v1311 = vmax.f32 %v1221, 0.0
      %v1312 = vmax.f32 %v1224, 0.0
      %v1313 = vmax.f32 %v1229, 0.0
      %v1314 = vmax.f32 %v1232, 0.0
      %v1315 = vmax.f32 %v1237, 0.0
      %v1316 = vmax.f32 %v1240, 0.0
      %v1317 = vmax.f32 %v1245, 0.0
      %v1318 = vmax.f32 %v1248, 0.0
      %v1319 = vmax.f32 %v1253, 0.0
      %v1320 = vmax.f32 %v1256, 0.0
      %v1321 = vmax.f32 %v1261, 0.0
      %v1322 = vmax.f32 %v1264, 0.0
      %v1323 = vmax.f32 %v1269, 0.0
      %v1324 = vmax.f32 %v1272, 0.0
      %v1325 = vmax.f32 %v1277, 0.0
      %v1326 = vmax.f32 %v1280, 0.0
      %v1327 = vmax.f32 %v1285, 0.0
      %v1328 = vmax.f32 %v1288, 0.0
      %v1329 = vmax.f32 %v1293, 0.0
      %v1330 = vmax.f32 %v1296, 0.0
      %v1331 = vpack.c.bf16 %v1300, %v1299
      %v1332 = vpack.c.bf16 %v1302, %v1301
      %v1333 = vpack.c.bf16 %v1304, %v1303
      %v1334 = vpack.c.bf16 %v1306, %v1305
      %v1335 = vpack.c.bf16 %v1308, %v1307
      %v1336 = vpack.c.bf16 %v1310, %v1309
      %v1337 = vpack.c.bf16 %v1312, %v1311
      %v1338 = vpack.c.bf16 %v1314, %v1313
      %v1339 = vpack.c.bf16 %v1316, %v1315
      %v1340 = vpack.c.bf16 %v1318, %v1317
      %v1341 = vpack.c.bf16 %v1320, %v1319
      %v1342 = vpack.c.bf16 %v1322, %v1321
      %v1343 = vpack.c.bf16 %v1324, %v1323
      %v1344 = vpack.c.bf16 %v1326, %v1325
      %v1345 = vpack.c.bf16 %v1328, %v1327
      %v1346 = vpack.c.bf16 %v1330, %v1329
      %s1347 = scalar_lea.vmem %s3, 128
      %v1348 = vld [vmem:[%s1347] sm:$0xf]
      %v1349 = vld [vmem:[%s1347 + $0x4] sm:$0xf]
      %v1350 = vld [vmem:[%s1347 + $0x8] sm:$0xf]
      %v1351 = vld [vmem:[%s1347 + $0xc] sm:$0xf]
      %v1352 = vld [vmem:[%s1347 + $0x10] sm:$0xf]
      %v1353 = vld [vmem:[%s1347 + $0x14] sm:$0xf]
      %v1354 = vld [vmem:[%s1347 + $0x18] sm:$0xf]
      %v1355 = vld [vmem:[%s1347 + $0x1c] sm:$0xf]
      %v1356 = vld [vmem:[%s1347 + $0x20] sm:$0xf]
      %v1357 = vld [vmem:[%s1347 + $0x24] sm:$0xf]
      %v1358 = vld [vmem:[%s1347 + $0x28] sm:$0xf]
      %v1359 = vld [vmem:[%s1347 + $0x2c] sm:$0xf]
      %v1360 = vld [vmem:[%s1347 + $0x30] sm:$0xf]
      %v1361 = vld [vmem:[%s1347 + $0x34] sm:$0xf]
      %v1362 = vld [vmem:[%s1347 + $0x38] sm:$0xf]
      %v1363 = vld [vmem:[%s1347 + $0x3c] sm:$0xf]
      %v1364 = vld [vmem:[%s4 + $0x2] sm:$0x1]
      %v1365 = vlaneseq
      %v1366 = vshrl.u32 %v1365, 7
      %v1367 = vsub.s32 0, %v1366
      %v1368 = vrot.slane %v1364, %v1367
      %v1385 = vunpack.c.l.b16 %v1348
      %v1386 = vunpack.c.l.b16 %v1349
      %v1387 = vunpack.c.l.b16 %v1350
      %v1388 = vunpack.c.l.b16 %v1351
      %v1389 = vunpack.c.l.b16 %v1352
      %v1390 = vunpack.c.l.b16 %v1353
      %v1391 = vunpack.c.l.b16 %v1354
      %v1392 = vunpack.c.l.b16 %v1355
      %v1393 = vunpack.c.l.b16 %v1356
      %v1394 = vunpack.c.l.b16 %v1357
      %v1395 = vunpack.c.l.b16 %v1358
      %v1396 = vunpack.c.l.b16 %v1359
      %v1397 = vunpack.c.l.b16 %v1360
      %v1398 = vunpack.c.l.b16 %v1361
      %v1399 = vunpack.c.l.b16 %v1362
      %v1400 = vunpack.c.l.b16 %v1363
      %v1401 = vpack.c.b16 %v1386, %v1385
      %v1402 = vpack.c.b16 %v1388, %v1387
      %v1403 = vpack.c.b16 %v1390, %v1389
      %v1404 = vpack.c.b16 %v1392, %v1391
      %v1405 = vpack.c.b16 %v1394, %v1393
      %v1406 = vpack.c.b16 %v1396, %v1395
      %v1407 = vpack.c.b16 %v1398, %v1397
      %v1408 = vpack.c.b16 %v1400, %v1399
      %1417 = vmatprep.subr.bf16.mxu0 0
      %1418 = vmatpush1.bf16.msra.mxu0 %v1401
      %1419 = vmatprep.subr.bf16.mxu0 0
      %1420 = vmatpush1.bf16.msra.mxu0 %v1402
      %1421 = vmatprep.subr.bf16.mxu0 0
      %1422 = vmatpush1.bf16.msra.mxu0 %v1403
      %1423 = vmatprep.subr.bf16.mxu0 0
      %1424 = vmatpush1.bf16.msra.mxu0 %v1404
      %1425 = vmatprep.subr.bf16.mxu0 0
      %1426 = vmatpush1.bf16.msra.mxu0 %v1405
      %1427 = vmatprep.subr.bf16.mxu0 0
      %1428 = vmatpush1.bf16.msra.mxu0 %v1406
      %1429 = vmatprep.subr.bf16.mxu0 0
      %1430 = vmatpush1.bf16.msra.mxu0 %v1407
      %1431 = vmatprep.subr.bf16.mxu0 0
      %1432 = vmatpush1.bf16.msra.mxu0 %v1408
      %1433 = vmatprep.subr.bf16.mxu0 0
      %1434 = vmatpush1.bf16.msra.mxu0 0
      %1435 = vmatprep.subr.bf16.mxu0 0
      %1436 = vmatpush1.bf16.msra.mxu0 0
      %1437 = vmatprep.subr.bf16.mxu0 0
      %1438 = vmatpush1.bf16.msra.mxu0 0
      %1439 = vmatprep.subr.bf16.mxu0 0
      %1440 = vmatpush1.bf16.msra.mxu0 0
      %1441 = vmatprep.subr.bf16.mxu0 0
      %1442 = vmatpush1.bf16.msra.mxu0 0
      %1443 = vmatprep.subr.bf16.mxu0 0
      %1444 = vmatpush1.bf16.msra.mxu0 0
      %1445 = vmatprep.subr.bf16.mxu0 0
      %1446 = vmatpush1.bf16.msra.mxu0 0
      %1447 = vmatprep.subr.bf16.mxu0 0
      %1448 = vmatpush1.bf16.msra.mxu0 0
      %1449 = vmatprep.mubr.bf16.mxu0 0
      %1450 = vmatmul.mubr.bf16.gmra.mrb[0].mxu0 %v1331
      %v1451 = vpop.f32.mrb[0].mxu0
      %v1452 = vadd.f32 %v1368, %v1451
      %v1453 = vpop.f32.mrb[0].mxu0
      %v1454 = vpop.f32.mrb[0].mxu0
      %v1455 = vadd.f32 %v1368, %v1454
      %v1456 = vpop.f32.mrb[0].mxu0
      %1457 = vmatprep.mubr.bf16.mxu0 0
      %1458 = vmatmul.mubr.bf16.gmra.mrb[0].mxu0 %v1332
      %v1459 = vpop.f32.mrb[0].mxu0
      %v1460 = vadd.f32 %v1368, %v1459
      %v1461 = vpop.f32.mrb[0].mxu0
      %v1462 = vpop.f32.mrb[0].mxu0
      %v1463 = vadd.f32 %v1368, %v1462
      %v1464 = vpop.f32.mrb[0].mxu0
      %1465 = vmatprep.mubr.bf16.mxu0 0
      %1466 = vmatmul.mubr.bf16.gmra.mrb[0].mxu0 %v1333
      %v1467 = vpop.f32.mrb[0].mxu0
      %v1468 = vadd.f32 %v1368, %v1467
      %v1469 = vpop.f32.mrb[0].mxu0
      %v1470 = vpop.f32.mrb[0].mxu0
      %v1471 = vadd.f32 %v1368, %v1470
      %v1472 = vpop.f32.mrb[0].mxu0
      %1473 = vmatprep.mubr.bf16.mxu0 0
      %1474 = vmatmul.mubr.bf16.gmra.mrb[0].mxu0 %v1334
      %v1475 = vpop.f32.mrb[0].mxu0
      %v1476 = vadd.f32 %v1368, %v1475
      %v1477 = vpop.f32.mrb[0].mxu0
      %v1478 = vpop.f32.mrb[0].mxu0
      %v1479 = vadd.f32 %v1368, %v1478
      %v1480 = vpop.f32.mrb[0].mxu0
      %1481 = vmatprep.mubr.bf16.mxu0 0
      %1482 = vmatmul.mubr.bf16.gmra.mrb[0].mxu0 %v1335
      %v1483 = vpop.f32.mrb[0].mxu0
      %v1484 = vadd.f32 %v1368, %v1483
      %v1485 = vpop.f32.mrb[0].mxu0
      %v1486 = vpop.f32.mrb[0].mxu0
      %v1487 = vadd.f32 %v1368, %v1486
      %v1488 = vpop.f32.mrb[0].mxu0
      %1489 = vmatprep.mubr.bf16.mxu0 0
      %1490 = vmatmul.mubr.bf16.gmra.mrb[0].mxu0 %v1336
      %v1491 = vpop.f32.mrb[0].mxu0
      %v1492 = vadd.f32 %v1368, %v1491
      %v1493 = vpop.f32.mrb[0].mxu0
      %v1494 = vpop.f32.mrb[0].mxu0
      %v1495 = vadd.f32 %v1368, %v1494
      %v1496 = vpop.f32.mrb[0].mxu0
      %1497 = vmatprep.mubr.bf16.mxu0 0
      %1498 = vmatmul.mubr.bf16.gmra.mrb[0].mxu0 %v1337
      %v1499 = vpop.f32.mrb[0].mxu0
      %v1500 = vadd.f32 %v1368, %v1499
      %v1501 = vpop.f32.mrb[0].mxu0
      %v1502 = vpop.f32.mrb[0].mxu0
      %v1503 = vadd.f32 %v1368, %v1502
      %v1504 = vpop.f32.mrb[0].mxu0
      %1505 = vmatprep.mubr.bf16.mxu0 0
      %1506 = vmatmul.mubr.bf16.gmra.mrb[0].mxu0 %v1338
      %v1507 = vpop.f32.mrb[0].mxu0
      %v1508 = vadd.f32 %v1368, %v1507
      %v1509 = vpop.f32.mrb[0].mxu0
      %v1510 = vpop.f32.mrb[0].mxu0
      %v1511 = vadd.f32 %v1368, %v1510
      %v1512 = vpop.f32.mrb[0].mxu0
      %1513 = vmatprep.mubr.bf16.mxu0 0
      %1514 = vmatmul.mubr.bf16.gmra.mrb[0].mxu0 %v1339
      %v1515 = vpop.f32.mrb[0].mxu0
      %v1516 = vadd.f32 %v1368, %v1515
      %v1517 = vpop.f32.mrb[0].mxu0
      %v1518 = vpop.f32.mrb[0].mxu0
      %v1519 = vadd.f32 %v1368, %v1518
      %v1520 = vpop.f32.mrb[0].mxu0
      %1521 = vmatprep.mubr.bf16.mxu0 0
      %1522 = vmatmul.mubr.bf16.gmra.mrb[0].mxu0 %v1340
      %v1523 = vpop.f32.mrb[0].mxu0
      %v1524 = vadd.f32 %v1368, %v1523
      %v1525 = vpop.f32.mrb[0].mxu0
      %v1526 = vpop.f32.mrb[0].mxu0
      %v1527 = vadd.f32 %v1368, %v1526
      %v1528 = vpop.f32.mrb[0].mxu0
      %1529 = vmatprep.mubr.bf16.mxu0 0
      %1530 = vmatmul.mubr.bf16.gmra.mrb[0].mxu0 %v1341
      %v1531 = vpop.f32.mrb[0].mxu0
      %v1532 = vadd.f32 %v1368, %v1531
      %v1533 = vpop.f32.mrb[0].mxu0
      %v1534 = vpop.f32.mrb[0].mxu0
      %v1535 = vadd.f32 %v1368, %v1534
      %v1536 = vpop.f32.mrb[0].mxu0
      %1537 = vmatprep.mubr.bf16.mxu0 0
      %1538 = vmatmul.mubr.bf16.gmra.mrb[0].mxu0 %v1342
      %v1539 = vpop.f32.mrb[0].mxu0
      %v1540 = vadd.f32 %v1368, %v1539
      %v1541 = vpop.f32.mrb[0].mxu0
      %v1542 = vpop.f32.mrb[0].mxu0
      %v1543 = vadd.f32 %v1368, %v1542
      %v1544 = vpop.f32.mrb[0].mxu0
      %1545 = vmatprep.mubr.bf16.mxu0 0
      %1546 = vmatmul.mubr.bf16.gmra.mrb[0].mxu0 %v1343
      %v1547 = vpop.f32.mrb[0].mxu0
      %v1548 = vadd.f32 %v1368, %v1547
      %v1549 = vpop.f32.mrb[0].mxu0
      %v1550 = vpop.f32.mrb[0].mxu0
      %v1551 = vadd.f32 %v1368, %v1550
      %v1552 = vpop.f32.mrb[0].mxu0
      %1553 = vmatprep.mubr.bf16.mxu0 0
      %1554 = vmatmul.mubr.bf16.gmra.mrb[0].mxu0 %v1344
      %v1555 = vpop.f32.mrb[0].mxu0
      %v1556 = vadd.f32 %v1368, %v1555
      %v1557 = vpop.f32.mrb[0].mxu0
      %v1558 = vpop.f32.mrb[0].mxu0
      %v1559 = vadd.f32 %v1368, %v1558
      %v1560 = vpop.f32.mrb[0].mxu0
      %1561 = vmatprep.mubr.bf16.mxu0 0
      %1562 = vmatmul.mubr.bf16.gmra.mrb[0].mxu0 %v1345
      %v1563 = vpop.f32.mrb[0].mxu0
      %v1564 = vadd.f32 %v1368, %v1563
      %v1565 = vpop.f32.mrb[0].mxu0
      %v1566 = vpop.f32.mrb[0].mxu0
      %v1567 = vadd.f32 %v1368, %v1566
      %v1568 = vpop.f32.mrb[0].mxu0
      %1569 = vmatprep.mubr.bf16.mxu0 0
      %1570 = vmatmul.mubr.bf16.gmra.mrb[0].mxu0 %v1346
      %v1571 = vpop.f32.mrb[0].mxu0
      %v1572 = vadd.f32 %v1368, %v1571
      %v1573 = vpop.f32.mrb[0].mxu0
      %v1574 = vpop.f32.mrb[0].mxu0
      %v1575 = vadd.f32 %v1368, %v1574
      %v1576 = vpop.f32.mrb[0].mxu0
      %1577 = vdwg.mxu0
      %v1578 = vmax.f32 %v1452, 0.0
      %v1579 = vmax.f32 %v1455, 0.0
      %v1580 = vmax.f32 %v1460, 0.0
      %v1581 = vmax.f32 %v1463, 0.0
      %v1582 = vmax.f32 %v1468, 0.0
      %v1583 = vmax.f32 %v1471, 0.0
      %v1584 = vmax.f32 %v1476, 0.0
      %v1585 = vmax.f32 %v1479, 0.0
      %v1586 = vmax.f32 %v1484, 0.0
      %v1587 = vmax.f32 %v1487, 0.0
      %v1588 = vmax.f32 %v1492, 0.0
      %v1589 = vmax.f32 %v1495, 0.0
      %v1590 = vmax.f32 %v1500, 0.0
      %v1591 = vmax.f32 %v1503, 0.0
      %v1592 = vmax.f32 %v1508, 0.0
      %v1593 = vmax.f32 %v1511, 0.0
      %v1594 = vmax.f32 %v1516, 0.0
      %v1595 = vmax.f32 %v1519, 0.0
      %v1596 = vmax.f32 %v1524, 0.0
      %v1597 = vmax.f32 %v1527, 0.0
      %v1598 = vmax.f32 %v1532, 0.0
      %v1599 = vmax.f32 %v1535, 0.0
      %v1600 = vmax.f32 %v1540, 0.0
      %v1601 = vmax.f32 %v1543, 0.0
      %v1602 = vmax.f32 %v1548, 0.0
      %v1603 = vmax.f32 %v1551, 0.0
      %v1604 = vmax.f32 %v1556, 0.0
      %v1605 = vmax.f32 %v1559, 0.0
      %v1606 = vmax.f32 %v1564, 0.0
      %v1607 = vmax.f32 %v1567, 0.0
      %v1608 = vmax.f32 %v1572, 0.0
      %v1609 = vmax.f32 %v1575, 0.0
      %v1610 = vpack.c.bf16 %v1579, %v1578
      %v1611 = vpack.c.bf16 %v1581, %v1580
      %v1612 = vpack.c.bf16 %v1583, %v1582
      %v1613 = vpack.c.bf16 %v1585, %v1584
      %v1614 = vpack.c.bf16 %v1587, %v1586
      %v1615 = vpack.c.bf16 %v1589, %v1588
      %v1616 = vpack.c.bf16 %v1591, %v1590
      %v1617 = vpack.c.bf16 %v1593, %v1592
      %v1618 = vpack.c.bf16 %v1595, %v1594
      %v1619 = vpack.c.bf16 %v1597, %v1596
      %v1620 = vpack.c.bf16 %v1599, %v1598
      %v1621 = vpack.c.bf16 %v1601, %v1600
      %v1622 = vpack.c.bf16 %v1603, %v1602
      %v1623 = vpack.c.bf16 %v1605, %v1604
      %v1624 = vpack.c.bf16 %v1607, %v1606
      %v1625 = vpack.c.bf16 %v1609, %v1608
      %v1626 = vld [vmem:[%s5] sm:$0xff]
      %v1627 = vld [vmem:[%s5 + $0x8] sm:$0xff]
      %v1628 = vld [vmem:[%s5 + $0x10] sm:$0xff]
      %v1629 = vld [vmem:[%s5 + $0x18] sm:$0xff]
      %v1630 = vld [vmem:[%s5 + $0x20] sm:$0xff]
      %v1631 = vld [vmem:[%s5 + $0x28] sm:$0xff]
      %v1632 = vld [vmem:[%s5 + $0x30] sm:$0xff]
      %v1633 = vld [vmem:[%s5 + $0x38] sm:$0xff]
      %v1634 = vld [vmem:[%s5 + $0x40] sm:$0xff]
      %v1635 = vld [vmem:[%s5 + $0x48] sm:$0xff]
      %v1636 = vld [vmem:[%s5 + $0x50] sm:$0xff]
      %v1637 = vld [vmem:[%s5 + $0x58] sm:$0xff]
      %v1638 = vld [vmem:[%s5 + $0x60] sm:$0xff]
      %v1639 = vld [vmem:[%s5 + $0x68] sm:$0xff]
      %v1640 = vld [vmem:[%s5 + $0x70] sm:$0xff]
      %v1641 = vld [vmem:[%s5 + $0x78] sm:$0xff]
      %v1642 = vld [vmem:[%s6] sm:$0x3]
      %v1644 = vlaneseq
      %v1645 = vshrl.u32 %v1644, 7
      %v1646 = vsub.s32 0, %v1645
      %v1647 = vrot.slane %v1642, %v1646
      %v1648 = vlaneseq
      %v1649 = vshrl.u32 %v1648, 7
      %v1650 = vsub.s32 1, %v1649
      %v1651 = vrot.slane %v1642, %v1650
      %v1670 = vunpack.c.l.b16 %v1626
      %v1671 = vunpack.c.h.b16 %v1626
      %v1672 = vunpack.c.l.b16 %v1627
      %v1673 = vunpack.c.h.b16 %v1627
      %v1674 = vunpack.c.l.b16 %v1628
      %v1675 = vunpack.c.h.b16 %v1628
      %v1676 = vunpack.c.l.b16 %v1629
      %v1677 = vunpack.c.h.b16 %v1629
      %v1678 = vunpack.c.l.b16 %v1630
      %v1679 = vunpack.c.h.b16 %v1630
      %v1680 = vunpack.c.l.b16 %v1631
      %v1681 = vunpack.c.h.b16 %v1631
      %v1682 = vunpack.c.l.b16 %v1632
      %v1683 = vunpack.c.h.b16 %v1632
      %v1684 = vunpack.c.l.b16 %v1633
      %v1685 = vunpack.c.h.b16 %v1633
      %v1686 = vunpack.c.l.b16 %v1634
      %v1687 = vunpack.c.h.b16 %v1634
      %v1688 = vunpack.c.l.b16 %v1635
      %v1689 = vunpack.c.h.b16 %v1635
      %v1690 = vunpack.c.l.b16 %v1636
      %v1691 = vunpack.c.h.b16 %v1636
      %v1692 = vunpack.c.l.b16 %v1637
      %v1693 = vunpack.c.h.b16 %v1637
      %v1694 = vunpack.c.l.b16 %v1638
      %v1695 = vunpack.c.h.b16 %v1638
      %v1696 = vunpack.c.l.b16 %v1639
      %v1697 = vunpack.c.h.b16 %v1639
      %v1698 = vunpack.c.l.b16 %v1640
      %v1699 = vunpack.c.h.b16 %v1640
      %v1700 = vunpack.c.l.b16 %v1641
      %v1701 = vunpack.c.h.b16 %v1641
      %v1702 = vpack.c.b16 %v1672, %v1670
      %v1703 = vpack.c.b16 %v1673, %v1671
      %v1704 = vpack.c.b16 %v1676, %v1674
      %v1705 = vpack.c.b16 %v1677, %v1675
      %v1706 = vpack.c.b16 %v1680, %v1678
      %v1707 = vpack.c.b16 %v1681, %v1679
      %v1708 = vpack.c.b16 %v1684, %v1682
      %v1709 = vpack.c.b16 %v1685, %v1683
      %v1710 = vpack.c.b16 %v1688, %v1686
      %v1711 = vpack.c.b16 %v1689, %v1687
      %v1712 = vpack.c.b16 %v1692, %v1690
      %v1713 = vpack.c.b16 %v1693, %v1691
      %v1714 = vpack.c.b16 %v1696, %v1694
      %v1715 = vpack.c.b16 %v1697, %v1695
      %v1716 = vpack.c.b16 %v1700, %v1698
      %v1717 = vpack.c.b16 %v1701, %v1699
      %1734 = vmatprep.subr.bf16.mxu0 %v1703
      %1735 = vmatpush1.bf16.msra.mxu0 %v1702
      %1736 = vmatprep.subr.bf16.mxu0 %v1705
      %1737 = vmatpush1.bf16.msra.mxu0 %v1704
      %1738 = vmatprep.subr.bf16.mxu0 %v1707
      %1739 = vmatpush1.bf16.msra.mxu0 %v1706
      %1740 = vmatprep.subr.bf16.mxu0 %v1709
      %1741 = vmatpush1.bf16.msra.mxu0 %v1708
      %1742 = vmatprep.subr.bf16.mxu0 %v1711
      %1743 = vmatpush1.bf16.msra.mxu0 %v1710
      %1744 = vmatprep.subr.bf16.mxu0 %v1713
      %1745 = vmatpush1.bf16.msra.mxu0 %v1712
      %1746 = vmatprep.subr.bf16.mxu0 %v1715
      %1747 = vmatpush1.bf16.msra.mxu0 %v1714
      %1748 = vmatprep.subr.bf16.mxu0 %v1717
      %1749 = vmatpush1.bf16.msra.mxu0 %v1716
      %1750 = vmatprep.subr.bf16.mxu0 0
      %1751 = vmatpush1.bf16.msra.mxu0 0
      %1752 = vmatprep.subr.bf16.mxu0 0
      %1753 = vmatpush1.bf16.msra.mxu0 0
      %1754 = vmatprep.subr.bf16.mxu0 0
      %1755 = vmatpush1.bf16.msra.mxu0 0
      %1756 = vmatprep.subr.bf16.mxu0 0
      %1757 = vmatpush1.bf16.msra.mxu0 0
      %1758 = vmatprep.subr.bf16.mxu0 0
      %1759 = vmatpush1.bf16.msra.mxu0 0
      %1760 = vmatprep.subr.bf16.mxu0 0
      %1761 = vmatpush1.bf16.msra.mxu0 0
      %1762 = vmatprep.subr.bf16.mxu0 0
      %1763 = vmatpush1.bf16.msra.mxu0 0
      %1764 = vmatprep.subr.bf16.mxu0 0
      %1765 = vmatpush1.bf16.msra.mxu0 0
      %1766 = vmatprep.mubr.bf16.mxu0 0
      %1767 = vmatmul.mubr.bf16.gmra.mrb[0].mxu0 %v1610
      %v1768 = vpop.f32.mrb[0].mxu0
      %v1769 = vadd.f32 %v1647, %v1768
      %v1770 = vpop.f32.mrb[0].mxu0
      %v1771 = vadd.f32 %v1651, %v1770
      %v1772 = vpop.f32.mrb[0].mxu0
      %v1773 = vadd.f32 %v1647, %v1772
      %v1774 = vpop.f32.mrb[0].mxu0
      %v1775 = vadd.f32 %v1651, %v1774
      %1776 = vmatprep.mubr.bf16.mxu0 0
      %1777 = vmatmul.mubr.bf16.gmra.mrb[0].mxu0 %v1611
      %v1778 = vpop.f32.mrb[0].mxu0
      %v1779 = vadd.f32 %v1647, %v1778
      %v1780 = vpop.f32.mrb[0].mxu0
      %v1781 = vadd.f32 %v1651, %v1780
      %v1782 = vpop.f32.mrb[0].mxu0
      %v1783 = vadd.f32 %v1647, %v1782
      %v1784 = vpop.f32.mrb[0].mxu0
      %v1785 = vadd.f32 %v1651, %v1784
      %1786 = vmatprep.mubr.bf16.mxu0 0
      %1787 = vmatmul.mubr.bf16.gmra.mrb[0].mxu0 %v1612
      %v1788 = vpop.f32.mrb[0].mxu0
      %v1789 = vadd.f32 %v1647, %v1788
      %v1790 = vpop.f32.mrb[0].mxu0
      %v1791 = vadd.f32 %v1651, %v1790
      %v1792 = vpop.f32.mrb[0].mxu0
      %v1793 = vadd.f32 %v1647, %v1792
      %v1794 = vpop.f32.mrb[0].mxu0
      %v1795 = vadd.f32 %v1651, %v1794
      %1796 = vmatprep.mubr.bf16.mxu0 0
      %1797 = vmatmul.mubr.bf16.gmra.mrb[0].mxu0 %v1613
      %v1798 = vpop.f32.mrb[0].mxu0
      %v1799 = vadd.f32 %v1647, %v1798
      %v1800 = vpop.f32.mrb[0].mxu0
      %v1801 = vadd.f32 %v1651, %v1800
      %v1802 = vpop.f32.mrb[0].mxu0
      %v1803 = vadd.f32 %v1647, %v1802
      %v1804 = vpop.f32.mrb[0].mxu0
      %v1805 = vadd.f32 %v1651, %v1804
      %1806 = vmatprep.mubr.bf16.mxu0 0
      %1807 = vmatmul.mubr.bf16.gmra.mrb[0].mxu0 %v1614
      %v1808 = vpop.f32.mrb[0].mxu0
      %v1809 = vadd.f32 %v1647, %v1808
      %v1810 = vpop.f32.mrb[0].mxu0
      %v1811 = vadd.f32 %v1651, %v1810
      %v1812 = vpop.f32.mrb[0].mxu0
      %v1813 = vadd.f32 %v1647, %v1812
      %v1814 = vpop.f32.mrb[0].mxu0
      %v1815 = vadd.f32 %v1651, %v1814
      %1816 = vmatprep.mubr.bf16.mxu0 0
      %1817 = vmatmul.mubr.bf16.gmra.mrb[0].mxu0 %v1615
      %v1818 = vpop.f32.mrb[0].mxu0
      %v1819 = vadd.f32 %v1647, %v1818
      %v1820 = vpop.f32.mrb[0].mxu0
      %v1821 = vadd.f32 %v1651, %v1820
      %v1822 = vpop.f32.mrb[0].mxu0
      %v1823 = vadd.f32 %v1647, %v1822
      %v1824 = vpop.f32.mrb[0].mxu0
      %v1825 = vadd.f32 %v1651, %v1824
      %1826 = vmatprep.mubr.bf16.mxu0 0
      %1827 = vmatmul.mubr.bf16.gmra.mrb[0].mxu0 %v1616
      %v1828 = vpop.f32.mrb[0].mxu0
      %v1829 = vadd.f32 %v1647, %v1828
      %v1830 = vpop.f32.mrb[0].mxu0
      %v1831 = vadd.f32 %v1651, %v1830
      %v1832 = vpop.f32.mrb[0].mxu0
      %v1833 = vadd.f32 %v1647, %v1832
      %v1834 = vpop.f32.mrb[0].mxu0
      %v1835 = vadd.f32 %v1651, %v1834
      %1836 = vmatprep.mubr.bf16.mxu0 0
      %1837 = vmatmul.mubr.bf16.gmra.mrb[0].mxu0 %v1617
      %v1838 = vpop.f32.mrb[0].mxu0
      %v1839 = vadd.f32 %v1647, %v1838
      %v1840 = vpop.f32.mrb[0].mxu0
      %v1841 = vadd.f32 %v1651, %v1840
      %v1842 = vpop.f32.mrb[0].mxu0
      %v1843 = vadd.f32 %v1647, %v1842
      %v1844 = vpop.f32.mrb[0].mxu0
      %v1845 = vadd.f32 %v1651, %v1844
      %1846 = vmatprep.mubr.bf16.mxu0 0
      %1847 = vmatmul.mubr.bf16.gmra.mrb[0].mxu0 %v1618
      %v1848 = vpop.f32.mrb[0].mxu0
      %v1849 = vadd.f32 %v1647, %v1848
      %v1850 = vpop.f32.mrb[0].mxu0
      %v1851 = vadd.f32 %v1651, %v1850
      %v1852 = vpop.f32.mrb[0].mxu0
      %v1853 = vadd.f32 %v1647, %v1852
      %v1854 = vpop.f32.mrb[0].mxu0
      %v1855 = vadd.f32 %v1651, %v1854
      %1856 = vmatprep.mubr.bf16.mxu0 0
      %1857 = vmatmul.mubr.bf16.gmra.mrb[0].mxu0 %v1619
      %v1858 = vpop.f32.mrb[0].mxu0
      %v1859 = vadd.f32 %v1647, %v1858
      %v1860 = vpop.f32.mrb[0].mxu0
      %v1861 = vadd.f32 %v1651, %v1860
      %v1862 = vpop.f32.mrb[0].mxu0
      %v1863 = vadd.f32 %v1647, %v1862
      %v1864 = vpop.f32.mrb[0].mxu0
      %v1865 = vadd.f32 %v1651, %v1864
      %1866 = vmatprep.mubr.bf16.mxu0 0
      %1867 = vmatmul.mubr.bf16.gmra.mrb[0].mxu0 %v1620
      %v1868 = vpop.f32.mrb[0].mxu0
      %v1869 = vadd.f32 %v1647, %v1868
      %v1870 = vpop.f32.mrb[0].mxu0
      %v1871 = vadd.f32 %v1651, %v1870
      %v1872 = vpop.f32.mrb[0].mxu0
      %v1873 = vadd.f32 %v1647, %v1872
      %v1874 = vpop.f32.mrb[0].mxu0
      %v1875 = vadd.f32 %v1651, %v1874
      %1876 = vmatprep.mubr.bf16.mxu0 0
      %1877 = vmatmul.mubr.bf16.gmra.mrb[0].mxu0 %v1621
      %v1878 = vpop.f32.mrb[0].mxu0
      %v1879 = vadd.f32 %v1647, %v1878
      %v1880 = vpop.f32.mrb[0].mxu0
      %v1881 = vadd.f32 %v1651, %v1880
      %v1882 = vpop.f32.mrb[0].mxu0
      %v1883 = vadd.f32 %v1647, %v1882
      %v1884 = vpop.f32.mrb[0].mxu0
      %v1885 = vadd.f32 %v1651, %v1884
      %1886 = vmatprep.mubr.bf16.mxu0 0
      %1887 = vmatmul.mubr.bf16.gmra.mrb[0].mxu0 %v1622
      %v1888 = vpop.f32.mrb[0].mxu0
      %v1889 = vadd.f32 %v1647, %v1888
      %v1890 = vpop.f32.mrb[0].mxu0
      %v1891 = vadd.f32 %v1651, %v1890
      %v1892 = vpop.f32.mrb[0].mxu0
      %v1893 = vadd.f32 %v1647, %v1892
      %v1894 = vpop.f32.mrb[0].mxu0
      %v1895 = vadd.f32 %v1651, %v1894
      %1896 = vmatprep.mubr.bf16.mxu0 0
      %1897 = vmatmul.mubr.bf16.gmra.mrb[0].mxu0 %v1623
      %v1898 = vpop.f32.mrb[0].mxu0
      %v1899 = vadd.f32 %v1647, %v1898
      %v1900 = vpop.f32.mrb[0].mxu0
      %v1901 = vadd.f32 %v1651, %v1900
      %v1902 = vpop.f32.mrb[0].mxu0
      %v1903 = vadd.f32 %v1647, %v1902
      %v1904 = vpop.f32.mrb[0].mxu0
      %v1905 = vadd.f32 %v1651, %v1904
      %1906 = vmatprep.mubr.bf16.mxu0 0
      %1907 = vmatmul.mubr.bf16.gmra.mrb[0].mxu0 %v1624
      %v1908 = vpop.f32.mrb[0].mxu0
      %v1909 = vadd.f32 %v1647, %v1908
      %v1910 = vpop.f32.mrb[0].mxu0
      %v1911 = vadd.f32 %v1651, %v1910
      %v1912 = vpop.f32.mrb[0].mxu0
      %v1913 = vadd.f32 %v1647, %v1912
      %v1914 = vpop.f32.mrb[0].mxu0
      %v1915 = vadd.f32 %v1651, %v1914
      %1916 = vmatprep.mubr.bf16.mxu0 0
      %1917 = vmatmul.mubr.bf16.gmra.mrb[0].mxu0 %v1625
      %v1918 = vpop.f32.mrb[0].mxu0
      %v1919 = vadd.f32 %v1647, %v1918
      %v1920 = vpop.f32.mrb[0].mxu0
      %v1921 = vadd.f32 %v1651, %v1920
      %v1922 = vpop.f32.mrb[0].mxu0
      %v1923 = vadd.f32 %v1647, %v1922
      %v1924 = vpop.f32.mrb[0].mxu0
      %v1925 = vadd.f32 %v1651, %v1924
      %1926 = vdwg.mxu0
      %v1927 = vmax.f32 %v1769, 0.0
      %v1928 = vmax.f32 %v1773, 0.0
      %v1929 = vmax.f32 %v1779, 0.0
      %v1930 = vmax.f32 %v1783, 0.0
      %v1931 = vmax.f32 %v1789, 0.0
      %v1932 = vmax.f32 %v1793, 0.0
      %v1933 = vmax.f32 %v1799, 0.0
      %v1934 = vmax.f32 %v1803, 0.0
      %v1935 = vmax.f32 %v1809, 0.0
      %v1936 = vmax.f32 %v1813, 0.0
      %v1937 = vmax.f32 %v1819, 0.0
      %v1938 = vmax.f32 %v1823, 0.0
      %v1939 = vmax.f32 %v1829, 0.0
      %v1940 = vmax.f32 %v1833, 0.0
      %v1941 = vmax.f32 %v1839, 0.0
      %v1942 = vmax.f32 %v1843, 0.0
      %v1943 = vmax.f32 %v1849, 0.0
      %v1944 = vmax.f32 %v1853, 0.0
      %v1945 = vmax.f32 %v1859, 0.0
      %v1946 = vmax.f32 %v1863, 0.0
      %v1947 = vmax.f32 %v1869, 0.0
      %v1948 = vmax.f32 %v1873, 0.0
      %v1949 = vmax.f32 %v1879, 0.0
      %v1950 = vmax.f32 %v1883, 0.0
      %v1951 = vmax.f32 %v1889, 0.0
      %v1952 = vmax.f32 %v1893, 0.0
      %v1953 = vmax.f32 %v1899, 0.0
      %v1954 = vmax.f32 %v1903, 0.0
      %v1955 = vmax.f32 %v1909, 0.0
      %v1956 = vmax.f32 %v1913, 0.0
      %v1957 = vmax.f32 %v1919, 0.0
      %v1958 = vmax.f32 %v1923, 0.0
      %v1959 = vpack.c.bf16 %v1928, %v1927
      %v1960 = vpack.c.bf16 %v1930, %v1929
      %v1961 = vpack.c.bf16 %v1932, %v1931
      %v1962 = vpack.c.bf16 %v1934, %v1933
      %v1963 = vpack.c.bf16 %v1936, %v1935
      %v1964 = vpack.c.bf16 %v1938, %v1937
      %v1965 = vpack.c.bf16 %v1940, %v1939
      %v1966 = vpack.c.bf16 %v1942, %v1941
      %v1967 = vpack.c.bf16 %v1944, %v1943
      %v1968 = vpack.c.bf16 %v1946, %v1945
      %v1969 = vpack.c.bf16 %v1948, %v1947
      %v1970 = vpack.c.bf16 %v1950, %v1949
      %v1971 = vpack.c.bf16 %v1952, %v1951
      %v1972 = vpack.c.bf16 %v1954, %v1953
      %v1973 = vpack.c.bf16 %v1956, %v1955
      %v1974 = vpack.c.bf16 %v1958, %v1957
      %v1975 = vld [vmem:[%s7] sm:$0xf]
      %v1976 = vld [vmem:[%s7 + $0x4] sm:$0xf]
      %v1977 = vld [vmem:[%s7 + $0x8] sm:$0xf]
      %v1978 = vld [vmem:[%s7 + $0xc] sm:$0xf]
      %v1979 = vld [vmem:[%s7 + $0x10] sm:$0xf]
      %v1980 = vld [vmem:[%s7 + $0x14] sm:$0xf]
      %v1981 = vld [vmem:[%s7 + $0x18] sm:$0xf]
      %v1982 = vld [vmem:[%s7 + $0x1c] sm:$0xf]
      %v1983 = vld [vmem:[%s7 + $0x20] sm:$0xf]
      %v1984 = vld [vmem:[%s7 + $0x24] sm:$0xf]
      %v1985 = vld [vmem:[%s7 + $0x28] sm:$0xf]
      %v1986 = vld [vmem:[%s7 + $0x2c] sm:$0xf]
      %v1987 = vld [vmem:[%s7 + $0x30] sm:$0xf]
      %v1988 = vld [vmem:[%s7 + $0x34] sm:$0xf]
      %v1989 = vld [vmem:[%s7 + $0x38] sm:$0xf]
      %v1990 = vld [vmem:[%s7 + $0x3c] sm:$0xf]
      %v1991 = vld [vmem:[%s8] sm:$0xf]
      %v1992 = vld [vmem:[%s8 + $0x4] sm:$0xf]
      %v1993 = vld [vmem:[%s8 + $0x8] sm:$0xf]
      %v1994 = vld [vmem:[%s8 + $0xc] sm:$0x3]
      %1995 = vrot.lane.b32.xlu0 %v526, 89
      %v1996 = vpop.permute.xlu0 %1995
      %1997 = vrot.lane.b32.xlu0 %v527, 89
      %v1998 = vpop.permute.xlu0 %1997
      %1999 = vrot.lane.b32.xlu0 %v528, 89
      %v2000 = vpop.permute.xlu0 %1999
      %2001 = vrot.lane.b32.xlu0 %v529, 89
      %v2002 = vpop.permute.xlu0 %2001
      %2003 = vrot.lane.b32.xlu0 %v530, 89
      %v2004 = vpop.permute.xlu0 %2003
      %2005 = vrot.lane.b32.xlu0 %v531, 89
      %v2006 = vpop.permute.xlu0 %2005
      %2007 = vrot.lane.b32.xlu0 %v532, 89
      %v2008 = vpop.permute.xlu0 %2007
      %2009 = vrot.lane.b32.xlu0 %v533, 89
      %v2010 = vpop.permute.xlu0 %2009
      %2011 = vrot.lane.b32.xlu0 %v534, 89
      %v2012 = vpop.permute.xlu0 %2011
      %2013 = vrot.lane.b32.xlu0 %v535, 89
      %v2014 = vpop.permute.xlu0 %2013
      %2015 = vrot.lane.b32.xlu0 %v536, 89
      %v2016 = vpop.permute.xlu0 %2015
      %2017 = vrot.lane.b32.xlu0 %v537, 89
      %v2018 = vpop.permute.xlu0 %2017
      %2019 = vrot.lane.b32.xlu0 %v538, 89
      %v2020 = vpop.permute.xlu0 %2019
      %2021 = vrot.lane.b32.xlu0 %v539, 89
      %v2022 = vpop.permute.xlu0 %2021
      %2023 = vrot.lane.b32.xlu0 %v540, 89
      %v2024 = vpop.permute.xlu0 %2023
      %2025 = vrot.lane.b32.xlu0 %v541, 89
      %v2026 = vpop.permute.xlu0 %2025
      %v2031 = vunpack.c.l.b16 %v1991
      %v2032 = vunpack.c.l.b16 %v1992
      %v2033 = vunpack.c.l.b16 %v1993
      %v2034 = vunpack.c.l.b16 %v1994
      %v2035 = vpack.c.b16 %v2032, %v2031
      %v2036 = vpack.c.b16 %v2034, %v2033
      %vm2038 = vcmask 220160
      %v2040 = vsel %vm2038, %v1996, 0
      %v2043 = vsel %vm2038, %v1998, 0
      %v2046 = vsel %vm2038, %v2000, 0
      %v2049 = vsel %vm2038, %v2002, 0
      %v2052 = vsel %vm2038, %v2004, 0
      %v2055 = vsel %vm2038, %v2006, 0
      %v2058 = vsel %vm2038, %v2008, 0
      %v2061 = vsel %vm2038, %v2010, 0
      %v2064 = vsel %vm2038, %v2012, 0
      %v2067 = vsel %vm2038, %v2014, 0
      %v2070 = vsel %vm2038, %v2016, 0
      %v2073 = vsel %vm2038, %v2018, 0
      %v2076 = vsel %vm2038, %v2020, 0
      %v2079 = vsel %vm2038, %v2022, 0
      %v2082 = vsel %vm2038, %v2024, 0
      %v2085 = vsel %vm2038, %v2026, 0
      %vm2087 = vcmask 1044480
      %vm2088 = vcmask 1045504
      %v2089 = vsel %vm2087, 4294967295, 65535
      %v2090 = vsel %vm2088, %v2089, 0
      %v2092 = vand.u32 %v2036, %v2090
      %2094 = vmatprep.subr.bf16.mxu0 0
      %2095 = vmatpush1.bf16.msra.mxu0 %v2035
      %2096 = vmatprep.subr.bf16.mxu0 0
      %2097 = vmatpush1.bf16.msra.mxu0 %v2092
      %2098 = vmatprep.subr.bf16.mxu0 0
      %2099 = vmatpush1.bf16.msra.mxu0 0
      %2100 = vmatprep.subr.bf16.mxu0 0
      %2101 = vmatpush1.bf16.msra.mxu0 0
      %2102 = vmatprep.subr.bf16.mxu0 0
      %2103 = vmatpush1.bf16.msra.mxu0 0
      %2104 = vmatprep.subr.bf16.mxu0 0
      %2105 = vmatpush1.bf16.msra.mxu0 0
      %2106 = vmatprep.subr.bf16.mxu0 0
      %2107 = vmatpush1.bf16.msra.mxu0 0
      %2108 = vmatprep.subr.bf16.mxu0 0
      %2109 = vmatpush1.bf16.msra.mxu0 0
      %2110 = vmatprep.subr.bf16.mxu0 0
      %2111 = vmatpush1.bf16.msra.mxu0 0
      %2112 = vmatprep.subr.bf16.mxu0 0
      %2113 = vmatpush1.bf16.msra.mxu0 0
      %2114 = vmatprep.subr.bf16.mxu0 0
      %2115 = vmatpush1.bf16.msra.mxu0 0
      %2116 = vmatprep.subr.bf16.mxu0 0
      %2117 = vmatpush1.bf16.msra.mxu0 0
      %2118 = vmatprep.subr.bf16.mxu0 0
      %2119 = vmatpush1.bf16.msra.mxu0 0
      %2120 = vmatprep.subr.bf16.mxu0 0
      %2121 = vmatpush1.bf16.msra.mxu0 0
      %2122 = vmatprep.subr.bf16.mxu0 0
      %2123 = vmatpush1.bf16.msra.mxu0 0
      %2124 = vmatprep.subr.bf16.mxu0 0
      %2125 = vmatpush1.bf16.msra.mxu0 0
      %2126 = vmatprep.mubr.bf16.mxu0 0
      %2127 = vmatmul.mubr.bf16.gmra.mrb[0].mxu0 %v2040
      %v2128 = vpop.f32.mrb[0].mxu0
      %v2129 = vadd.f32 0.0, %v2128
      %v2130 = vpop.f32.mrb[0].mxu0
      %v2131 = vpop.f32.mrb[0].mxu0
      %v2132 = vadd.f32 0.0, %v2131
      %v2133 = vpop.f32.mrb[0].mxu0
      %2134 = vmatprep.mubr.bf16.mxu0 0
      %2135 = vmatmul.mubr.bf16.gmra.mrb[0].mxu0 %v2043
      %v2136 = vpop.f32.mrb[0].mxu0
      %v2137 = vadd.f32 0.0, %v2136
      %v2138 = vpop.f32.mrb[0].mxu0
      %v2139 = vpop.f32.mrb[0].mxu0
      %v2140 = vadd.f32 0.0, %v2139
      %v2141 = vpop.f32.mrb[0].mxu0
      %2142 = vmatprep.mubr.bf16.mxu0 0
      %2143 = vmatmul.mubr.bf16.gmra.mrb[0].mxu0 %v2046
      %v2144 = vpop.f32.mrb[0].mxu0
      %v2145 = vadd.f32 0.0, %v2144
      %v2146 = vpop.f32.mrb[0].mxu0
      %v2147 = vpop.f32.mrb[0].mxu0
      %v2148 = vadd.f32 0.0, %v2147
      %v2149 = vpop.f32.mrb[0].mxu0
      %2150 = vmatprep.mubr.bf16.mxu0 0
      %2151 = vmatmul.mubr.bf16.gmra.mrb[0].mxu0 %v2049
      %v2152 = vpop.f32.mrb[0].mxu0
      %v2153 = vadd.f32 0.0, %v2152
      %v2154 = vpop.f32.mrb[0].mxu0
      %v2155 = vpop.f32.mrb[0].mxu0
      %v2156 = vadd.f32 0.0, %v2155
      %v2157 = vpop.f32.mrb[0].mxu0
      %2158 = vmatprep.mubr.bf16.mxu0 0
      %2159 = vmatmul.mubr.bf16.gmra.mrb[0].mxu0 %v2052
      %v2160 = vpop.f32.mrb[0].mxu0
      %v2161 = vadd.f32 0.0, %v2160
      %v2162 = vpop.f32.mrb[0].mxu0
      %v2163 = vpop.f32.mrb[0].mxu0
      %v2164 = vadd.f32 0.0, %v2163
      %v2165 = vpop.f32.mrb[0].mxu0
      %2166 = vmatprep.mubr.bf16.mxu0 0
      %2167 = vmatmul.mubr.bf16.gmra.mrb[0].mxu0 %v2055
      %v2168 = vpop.f32.mrb[0].mxu0
      %v2169 = vadd.f32 0.0, %v2168
      %v2170 = vpop.f32.mrb[0].mxu0
      %v2171 = vpop.f32.mrb[0].mxu0
      %v2172 = vadd.f32 0.0, %v2171
      %v2173 = vpop.f32.mrb[0].mxu0
      %2174 = vmatprep.mubr.bf16.mxu0 0
      %2175 = vmatmul.mubr.bf16.gmra.mrb[0].mxu0 %v2058
      %v2176 = vpop.f32.mrb[0].mxu0
      %v2177 = vadd.f32 0.0, %v2176
      %v2178 = vpop.f32.mrb[0].mxu0
      %v2179 = vpop.f32.mrb[0].mxu0
      %v2180 = vadd.f32 0.0, %v2179
      %v2181 = vpop.f32.mrb[0].mxu0
      %2182 = vmatprep.mubr.bf16.mxu0 0
      %2183 = vmatmul.mubr.bf16.gmra.mrb[0].mxu0 %v2061
      %v2184 = vpop.f32.mrb[0].mxu0
      %v2185 = vadd.f32 0.0, %v2184
      %v2186 = vpop.f32.mrb[0].mxu0
      %v2187 = vpop.f32.mrb[0].mxu0
      %v2188 = vadd.f32 0.0, %v2187
      %v2189 = vpop.f32.mrb[0].mxu0
      %2190 = vmatprep.mubr.bf16.mxu0 0
      %2191 = vmatmul.mubr.bf16.gmra.mrb[0].mxu0 %v2064
      %v2192 = vpop.f32.mrb[0].mxu0
      %v2193 = vadd.f32 0.0, %v2192
      %v2194 = vpop.f32.mrb[0].mxu0
      %v2195 = vpop.f32.mrb[0].mxu0
      %v2196 = vadd.f32 0.0, %v2195
      %v2197 = vpop.f32.mrb[0].mxu0
      %2198 = vmatprep.mubr.bf16.mxu0 0
      %2199 = vmatmul.mubr.bf16.gmra.mrb[0].mxu0 %v2067
      %v2200 = vpop.f32.mrb[0].mxu0
      %v2201 = vadd.f32 0.0, %v2200
      %v2202 = vpop.f32.mrb[0].mxu0
      %v2203 = vpop.f32.mrb[0].mxu0
      %v2204 = vadd.f32 0.0, %v2203
      %v2205 = vpop.f32.mrb[0].mxu0
      %2206 = vmatprep.mubr.bf16.mxu0 0
      %2207 = vmatmul.mubr.bf16.gmra.mrb[0].mxu0 %v2070
      %v2208 = vpop.f32.mrb[0].mxu0
      %v2209 = vadd.f32 0.0, %v2208
      %v2210 = vpop.f32.mrb[0].mxu0
      %v2211 = vpop.f32.mrb[0].mxu0
      %v2212 = vadd.f32 0.0, %v2211
      %v2213 = vpop.f32.mrb[0].mxu0
      %2214 = vmatprep.mubr.bf16.mxu0 0
      %2215 = vmatmul.mubr.bf16.gmra.mrb[0].mxu0 %v2073
      %v2216 = vpop.f32.mrb[0].mxu0
      %v2217 = vadd.f32 0.0, %v2216
      %v2218 = vpop.f32.mrb[0].mxu0
      %v2219 = vpop.f32.mrb[0].mxu0
      %v2220 = vadd.f32 0.0, %v2219
      %v2221 = vpop.f32.mrb[0].mxu0
      %2222 = vmatprep.mubr.bf16.mxu0 0
      %2223 = vmatmul.mubr.bf16.gmra.mrb[0].mxu0 %v2076
      %v2224 = vpop.f32.mrb[0].mxu0
      %v2225 = vadd.f32 0.0, %v2224
      %v2226 = vpop.f32.mrb[0].mxu0
      %v2227 = vpop.f32.mrb[0].mxu0
      %v2228 = vadd.f32 0.0, %v2227
      %v2229 = vpop.f32.mrb[0].mxu0
      %2230 = vmatprep.mubr.bf16.mxu0 0
      %2231 = vmatmul.mubr.bf16.gmra.mrb[0].mxu0 %v2079
      %v2232 = vpop.f32.mrb[0].mxu0
      %v2233 = vadd.f32 0.0, %v2232
      %v2234 = vpop.f32.mrb[0].mxu0
      %v2235 = vpop.f32.mrb[0].mxu0
      %v2236 = vadd.f32 0.0, %v2235
      %v2237 = vpop.f32.mrb[0].mxu0
      %2238 = vmatprep.mubr.bf16.mxu0 0
      %2239 = vmatmul.mubr.bf16.gmra.mrb[0].mxu0 %v2082
      %v2240 = vpop.f32.mrb[0].mxu0
      %v2241 = vadd.f32 0.0, %v2240
      %v2242 = vpop.f32.mrb[0].mxu0
      %v2243 = vpop.f32.mrb[0].mxu0
      %v2244 = vadd.f32 0.0, %v2243
      %v2245 = vpop.f32.mrb[0].mxu0
      %2246 = vmatprep.mubr.bf16.mxu0 0
      %2247 = vmatmul.mubr.bf16.gmra.mrb[0].mxu0 %v2085
      %v2248 = vpop.f32.mrb[0].mxu0
      %v2249 = vadd.f32 0.0, %v2248
      %v2250 = vpop.f32.mrb[0].mxu0
      %v2251 = vpop.f32.mrb[0].mxu0
      %v2252 = vadd.f32 0.0, %v2251
      %v2253 = vpop.f32.mrb[0].mxu0
      %2254 = vdwg.mxu0
      %v2271 = vunpack.c.l.b16 %v1975
      %v2272 = vunpack.c.l.b16 %v1976
      %v2273 = vunpack.c.l.b16 %v1977
      %v2274 = vunpack.c.l.b16 %v1978
      %v2275 = vunpack.c.l.b16 %v1979
      %v2276 = vunpack.c.l.b16 %v1980
      %v2277 = vunpack.c.l.b16 %v1981
      %v2278 = vunpack.c.l.b16 %v1982
      %v2279 = vunpack.c.l.b16 %v1983
      %v2280 = vunpack.c.l.b16 %v1984
      %v2281 = vunpack.c.l.b16 %v1985
      %v2282 = vunpack.c.l.b16 %v1986
      %v2283 = vunpack.c.l.b16 %v1987
      %v2284 = vunpack.c.l.b16 %v1988
      %v2285 = vunpack.c.l.b16 %v1989
      %v2286 = vunpack.c.l.b16 %v1990
      %v2287 = vpack.c.b16 %v2272, %v2271
      %v2288 = vpack.c.b16 %v2274, %v2273
      %v2289 = vpack.c.b16 %v2276, %v2275
      %v2290 = vpack.c.b16 %v2278, %v2277
      %v2291 = vpack.c.b16 %v2280, %v2279
      %v2292 = vpack.c.b16 %v2282, %v2281
      %v2293 = vpack.c.b16 %v2284, %v2283
      %v2294 = vpack.c.b16 %v2286, %v2285
      %2303 = vmatprep.subr.bf16.mxu0 0
      %2304 = vmatpush1.bf16.msra.mxu0 %v2287
      %2305 = vmatprep.subr.bf16.mxu0 0
      %2306 = vmatpush1.bf16.msra.mxu0 %v2288
      %2307 = vmatprep.subr.bf16.mxu0 0
      %2308 = vmatpush1.bf16.msra.mxu0 %v2289
      %2309 = vmatprep.subr.bf16.mxu0 0
      %2310 = vmatpush1.bf16.msra.mxu0 %v2290
      %2311 = vmatprep.subr.bf16.mxu0 0
      %2312 = vmatpush1.bf16.msra.mxu0 %v2291
      %2313 = vmatprep.subr.bf16.mxu0 0
      %2314 = vmatpush1.bf16.msra.mxu0 %v2292
      %2315 = vmatprep.subr.bf16.mxu0 0
      %2316 = vmatpush1.bf16.msra.mxu0 %v2293
      %2317 = vmatprep.subr.bf16.mxu0 0
      %2318 = vmatpush1.bf16.msra.mxu0 %v2294
      %2319 = vmatprep.subr.bf16.mxu0 0
      %2320 = vmatpush1.bf16.msra.mxu0 0
      %2321 = vmatprep.subr.bf16.mxu0 0
      %2322 = vmatpush1.bf16.msra.mxu0 0
      %2323 = vmatprep.subr.bf16.mxu0 0
      %2324 = vmatpush1.bf16.msra.mxu0 0
      %2325 = vmatprep.subr.bf16.mxu0 0
      %2326 = vmatpush1.bf16.msra.mxu0 0
      %2327 = vmatprep.subr.bf16.mxu0 0
      %2328 = vmatpush1.bf16.msra.mxu0 0
      %2329 = vmatprep.subr.bf16.mxu0 0
      %2330 = vmatpush1.bf16.msra.mxu0 0
      %2331 = vmatprep.subr.bf16.mxu0 0
      %2332 = vmatpush1.bf16.msra.mxu0 0
      %2333 = vmatprep.subr.bf16.mxu0 0
      %2334 = vmatpush1.bf16.msra.mxu0 0
      %2335 = vmatprep.mubr.bf16.mxu0 0
      %2336 = vmatmul.mubr.bf16.gmra.mrb[0].mxu0 %v1959
      %v2337 = vpop.f32.mrb[0].mxu0
      %v2338 = vadd.f32 %v2129, %v2337
      %v2339 = vpop.f32.mrb[0].mxu0
      %v2340 = vpop.f32.mrb[0].mxu0
      %v2341 = vadd.f32 %v2132, %v2340
      %v2342 = vpop.f32.mrb[0].mxu0
      %2343 = vmatprep.mubr.bf16.mxu0 0
      %2344 = vmatmul.mubr.bf16.gmra.mrb[0].mxu0 %v1960
      %v2345 = vpop.f32.mrb[0].mxu0
      %v2346 = vadd.f32 %v2137, %v2345
      %v2347 = vpop.f32.mrb[0].mxu0
      %v2348 = vpop.f32.mrb[0].mxu0
      %v2349 = vadd.f32 %v2140, %v2348
      %v2350 = vpop.f32.mrb[0].mxu0
      %2351 = vmatprep.mubr.bf16.mxu0 0
      %2352 = vmatmul.mubr.bf16.gmra.mrb[0].mxu0 %v1961
      %v2353 = vpop.f32.mrb[0].mxu0
      %v2354 = vadd.f32 %v2145, %v2353
      %v2355 = vpop.f32.mrb[0].mxu0
      %v2356 = vpop.f32.mrb[0].mxu0
      %v2357 = vadd.f32 %v2148, %v2356
      %v2358 = vpop.f32.mrb[0].mxu0
      %2359 = vmatprep.mubr.bf16.mxu0 0
      %2360 = vmatmul.mubr.bf16.gmra.mrb[0].mxu0 %v1962
      %v2361 = vpop.f32.mrb[0].mxu0
      %v2362 = vadd.f32 %v2153, %v2361
      %v2363 = vpop.f32.mrb[0].mxu0
      %v2364 = vpop.f32.mrb[0].mxu0
      %v2365 = vadd.f32 %v2156, %v2364
      %v2366 = vpop.f32.mrb[0].mxu0
      %2367 = vmatprep.mubr.bf16.mxu0 0
      %2368 = vmatmul.mubr.bf16.gmra.mrb[0].mxu0 %v1963
      %v2369 = vpop.f32.mrb[0].mxu0
      %v2370 = vadd.f32 %v2161, %v2369
      %v2371 = vpop.f32.mrb[0].mxu0
      %v2372 = vpop.f32.mrb[0].mxu0
      %v2373 = vadd.f32 %v2164, %v2372
      %v2374 = vpop.f32.mrb[0].mxu0
      %2375 = vmatprep.mubr.bf16.mxu0 0
      %2376 = vmatmul.mubr.bf16.gmra.mrb[0].mxu0 %v1964
      %v2377 = vpop.f32.mrb[0].mxu0
      %v2378 = vadd.f32 %v2169, %v2377
      %v2379 = vpop.f32.mrb[0].mxu0
      %v2380 = vpop.f32.mrb[0].mxu0
      %v2381 = vadd.f32 %v2172, %v2380
      %v2382 = vpop.f32.mrb[0].mxu0
      %2383 = vmatprep.mubr.bf16.mxu0 0
      %2384 = vmatmul.mubr.bf16.gmra.mrb[0].mxu0 %v1965
      %v2385 = vpop.f32.mrb[0].mxu0
      %v2386 = vadd.f32 %v2177, %v2385
      %v2387 = vpop.f32.mrb[0].mxu0
      %v2388 = vpop.f32.mrb[0].mxu0
      %v2389 = vadd.f32 %v2180, %v2388
      %v2390 = vpop.f32.mrb[0].mxu0
      %2391 = vmatprep.mubr.bf16.mxu0 0
      %2392 = vmatmul.mubr.bf16.gmra.mrb[0].mxu0 %v1966
      %v2393 = vpop.f32.mrb[0].mxu0
      %v2394 = vadd.f32 %v2185, %v2393
      %v2395 = vpop.f32.mrb[0].mxu0
      %v2396 = vpop.f32.mrb[0].mxu0
      %v2397 = vadd.f32 %v2188, %v2396
      %v2398 = vpop.f32.mrb[0].mxu0
      %2399 = vmatprep.mubr.bf16.mxu0 0
      %2400 = vmatmul.mubr.bf16.gmra.mrb[0].mxu0 %v1967
      %v2401 = vpop.f32.mrb[0].mxu0
      %v2402 = vadd.f32 %v2193, %v2401
      %v2403 = vpop.f32.mrb[0].mxu0
      %v2404 = vpop.f32.mrb[0].mxu0
      %v2405 = vadd.f32 %v2196, %v2404
      %v2406 = vpop.f32.mrb[0].mxu0
      %2407 = vmatprep.mubr.bf16.mxu0 0
      %2408 = vmatmul.mubr.bf16.gmra.mrb[0].mxu0 %v1968
      %v2409 = vpop.f32.mrb[0].mxu0
      %v2410 = vadd.f32 %v2201, %v2409
      %v2411 = vpop.f32.mrb[0].mxu0
      %v2412 = vpop.f32.mrb[0].mxu0
      %v2413 = vadd.f32 %v2204, %v2412
      %v2414 = vpop.f32.mrb[0].mxu0
      %2415 = vmatprep.mubr.bf16.mxu0 0
      %2416 = vmatmul.mubr.bf16.gmra.mrb[0].mxu0 %v1969
      %v2417 = vpop.f32.mrb[0].mxu0
      %v2418 = vadd.f32 %v2209, %v2417
      %v2419 = vpop.f32.mrb[0].mxu0
      %v2420 = vpop.f32.mrb[0].mxu0
      %v2421 = vadd.f32 %v2212, %v2420
      %v2422 = vpop.f32.mrb[0].mxu0
      %2423 = vmatprep.mubr.bf16.mxu0 0
      %2424 = vmatmul.mubr.bf16.gmra.mrb[0].mxu0 %v1970
      %v2425 = vpop.f32.mrb[0].mxu0
      %v2426 = vadd.f32 %v2217, %v2425
      %v2427 = vpop.f32.mrb[0].mxu0
      %v2428 = vpop.f32.mrb[0].mxu0
      %v2429 = vadd.f32 %v2220, %v2428
      %v2430 = vpop.f32.mrb[0].mxu0
      %2431 = vmatprep.mubr.bf16.mxu0 0
      %2432 = vmatmul.mubr.bf16.gmra.mrb[0].mxu0 %v1971
      %v2433 = vpop.f32.mrb[0].mxu0
      %v2434 = vadd.f32 %v2225, %v2433
      %v2435 = vpop.f32.mrb[0].mxu0
      %v2436 = vpop.f32.mrb[0].mxu0
      %v2437 = vadd.f32 %v2228, %v2436
      %v2438 = vpop.f32.mrb[0].mxu0
      %2439 = vmatprep.mubr.bf16.mxu0 0
      %2440 = vmatmul.mubr.bf16.gmra.mrb[0].mxu0 %v1972
      %v2441 = vpop.f32.mrb[0].mxu0
      %v2442 = vadd.f32 %v2233, %v2441
      %v2443 = vpop.f32.mrb[0].mxu0
      %v2444 = vpop.f32.mrb[0].mxu0
      %v2445 = vadd.f32 %v2236, %v2444
      %v2446 = vpop.f32.mrb[0].mxu0
      %2447 = vmatprep.mubr.bf16.mxu0 0
      %2448 = vmatmul.mubr.bf16.gmra.mrb[0].mxu0 %v1973
      %v2449 = vpop.f32.mrb[0].mxu0
      %v2450 = vadd.f32 %v2241, %v2449
      %v2451 = vpop.f32.mrb[0].mxu0
      %v2452 = vpop.f32.mrb[0].mxu0
      %v2453 = vadd.f32 %v2244, %v2452
      %v2454 = vpop.f32.mrb[0].mxu0
      %2455 = vmatprep.mubr.bf16.mxu0 0
      %2456 = vmatmul.mubr.bf16.gmra.mrb[0].mxu0 %v1974
      %v2457 = vpop.f32.mrb[0].mxu0
      %v2458 = vadd.f32 %v2249, %v2457
      %v2459 = vpop.f32.mrb[0].mxu0
      %v2460 = vpop.f32.mrb[0].mxu0
      %v2461 = vadd.f32 %v2252, %v2460
      %v2462 = vpop.f32.mrb[0].mxu0
      %2463 = vdwg.mxu0
      %v2464 = vld [vmem:[%s9] sm:$0x1]
      %v2466 = vlaneseq
      %v2467 = vshrl.u32 %v2466, 7
      %v2468 = vsub.s32 0, %v2467
      %v2469 = vrot.slane %v2464, %v2468
      %v2471 = vadd.f32 %v2338, %v2469
      %v2472 = vadd.f32 %v2341, %v2469
      %v2473 = vadd.f32 %v2346, %v2469
      %v2474 = vadd.f32 %v2349, %v2469
      %v2475 = vadd.f32 %v2354, %v2469
      %v2476 = vadd.f32 %v2357, %v2469
      %v2477 = vadd.f32 %v2362, %v2469
      %v2478 = vadd.f32 %v2365, %v2469
      %v2479 = vadd.f32 %v2370, %v2469
      %v2480 = vadd.f32 %v2373, %v2469
      %v2481 = vadd.f32 %v2378, %v2469
      %v2482 = vadd.f32 %v2381, %v2469
      %v2483 = vadd.f32 %v2386, %v2469
      %v2484 = vadd.f32 %v2389, %v2469
      %v2485 = vadd.f32 %v2394, %v2469
      %v2486 = vadd.f32 %v2397, %v2469
      %v2487 = vadd.f32 %v2402, %v2469
      %v2488 = vadd.f32 %v2405, %v2469
      %v2489 = vadd.f32 %v2410, %v2469
      %v2490 = vadd.f32 %v2413, %v2469
      %v2491 = vadd.f32 %v2418, %v2469
      %v2492 = vadd.f32 %v2421, %v2469
      %v2493 = vadd.f32 %v2426, %v2469
      %v2494 = vadd.f32 %v2429, %v2469
      %v2495 = vadd.f32 %v2434, %v2469
      %v2496 = vadd.f32 %v2437, %v2469
      %v2497 = vadd.f32 %v2442, %v2469
      %v2498 = vadd.f32 %v2445, %v2469
      %v2499 = vadd.f32 %v2450, %v2469
      %v2500 = vadd.f32 %v2453, %v2469
      %v2501 = vadd.f32 %v2458, %v2469
      %v2502 = vadd.f32 %v2461, %v2469
      %v2503 = vmax.f32 %v2471, 0.0
      %v2504 = vmax.f32 %v2472, 0.0
      %v2505 = vmax.f32 %v2473, 0.0
      %v2506 = vmax.f32 %v2474, 0.0
      %v2507 = vmax.f32 %v2475, 0.0
      %v2508 = vmax.f32 %v2476, 0.0
      %v2509 = vmax.f32 %v2477, 0.0
      %v2510 = vmax.f32 %v2478, 0.0
      %v2511 = vmax.f32 %v2479, 0.0
      %v2512 = vmax.f32 %v2480, 0.0
      %v2513 = vmax.f32 %v2481, 0.0
      %v2514 = vmax.f32 %v2482, 0.0
      %v2515 = vmax.f32 %v2483, 0.0
      %v2516 = vmax.f32 %v2484, 0.0
      %v2517 = vmax.f32 %v2485, 0.0
      %v2518 = vmax.f32 %v2486, 0.0
      %v2519 = vmax.f32 %v2487, 0.0
      %v2520 = vmax.f32 %v2488, 0.0
      %v2521 = vmax.f32 %v2489, 0.0
      %v2522 = vmax.f32 %v2490, 0.0
      %v2523 = vmax.f32 %v2491, 0.0
      %v2524 = vmax.f32 %v2492, 0.0
      %v2525 = vmax.f32 %v2493, 0.0
      %v2526 = vmax.f32 %v2494, 0.0
      %v2527 = vmax.f32 %v2495, 0.0
      %v2528 = vmax.f32 %v2496, 0.0
      %v2529 = vmax.f32 %v2497, 0.0
      %v2530 = vmax.f32 %v2498, 0.0
      %v2531 = vmax.f32 %v2499, 0.0
      %v2532 = vmax.f32 %v2500, 0.0
      %v2533 = vmax.f32 %v2501, 0.0
      %v2534 = vmax.f32 %v2502, 0.0
      %v2535 = vpack.c.bf16 %v2504, %v2503
      %v2536 = vpack.c.bf16 %v2506, %v2505
      %v2537 = vpack.c.bf16 %v2508, %v2507
      %v2538 = vpack.c.bf16 %v2510, %v2509
      %v2539 = vpack.c.bf16 %v2512, %v2511
      %v2540 = vpack.c.bf16 %v2514, %v2513
      %v2541 = vpack.c.bf16 %v2516, %v2515
      %v2542 = vpack.c.bf16 %v2518, %v2517
      %v2543 = vpack.c.bf16 %v2520, %v2519
      %v2544 = vpack.c.bf16 %v2522, %v2521
      %v2545 = vpack.c.bf16 %v2524, %v2523
      %v2546 = vpack.c.bf16 %v2526, %v2525
      %v2547 = vpack.c.bf16 %v2528, %v2527
      %v2548 = vpack.c.bf16 %v2530, %v2529
      %v2549 = vpack.c.bf16 %v2532, %v2531
      %v2550 = vpack.c.bf16 %v2534, %v2533
      %v2551 = vld [vmem:[%s10] sm:$0xf]
      %v2552 = vld [vmem:[%s10 + $0x4] sm:$0xf]
      %v2553 = vld [vmem:[%s10 + $0x8] sm:$0xf]
      %v2554 = vld [vmem:[%s10 + $0xc] sm:$0xf]
      %v2555 = vld [vmem:[%s10 + $0x10] sm:$0xf]
      %v2556 = vld [vmem:[%s10 + $0x14] sm:$0xf]
      %v2557 = vld [vmem:[%s10 + $0x18] sm:$0xf]
      %v2558 = vld [vmem:[%s10 + $0x1c] sm:$0xf]
      %v2559 = vld [vmem:[%s11] sm:$0x1]
      %v2561 = vlaneseq
      %v2562 = vshrl.u32 %v2561, 7
      %v2563 = vsub.s32 0, %v2562
      %v2564 = vrot.slane %v2559, %v2563
      %v2574 = vunpack.c.l.b16 %v2551
      %v2575 = vunpack.c.l.b16 %v2552
      %v2576 = vunpack.c.l.b16 %v2553
      %v2577 = vunpack.c.l.b16 %v2554
      %v2578 = vunpack.c.l.b16 %v2555
      %v2579 = vunpack.c.l.b16 %v2556
      %v2580 = vunpack.c.l.b16 %v2557
      %v2581 = vunpack.c.l.b16 %v2558
      %v2582 = vpack.c.b16 %v2575, %v2574
      %v2583 = vpack.c.b16 %v2577, %v2576
      %v2584 = vpack.c.b16 %v2579, %v2578
      %v2585 = vpack.c.b16 %v2581, %v2580
      %vm2590 = vcmask 523264
      %v2592 = vsel %vm2590, %v2535, 0
      %v2595 = vsel %vm2590, %v2536, 0
      %v2598 = vsel %vm2590, %v2537, 0
      %v2601 = vsel %vm2590, %v2538, 0
      %v2604 = vsel %vm2590, %v2539, 0
      %v2607 = vsel %vm2590, %v2540, 0
      %v2610 = vsel %vm2590, %v2541, 0
      %v2613 = vsel %vm2590, %v2542, 0
      %v2616 = vsel %vm2590, %v2543, 0
      %v2619 = vsel %vm2590, %v2544, 0
      %v2622 = vsel %vm2590, %v2545, 0
      %v2625 = vsel %vm2590, %v2546, 0
      %v2628 = vsel %vm2590, %v2547, 0
      %v2631 = vsel %vm2590, %v2548, 0
      %v2634 = vsel %vm2590, %v2549, 0
      %v2637 = vsel %vm2590, %v2550, 0
      %2639 = vmatprep.subr.bf16.mxu0 0
      %2640 = vmatpush1.bf16.msra.mxu0 %v2582
      %2641 = vmatprep.subr.bf16.mxu0 0
      %2642 = vmatpush1.bf16.msra.mxu0 %v2583
      %2643 = vmatprep.subr.bf16.mxu0 0
      %2644 = vmatpush1.bf16.msra.mxu0 %v2584
      %2645 = vmatprep.subr.bf16.mxu0 0
      %2646 = vmatpush1.bf16.msra.mxu0 %v2585
      %2647 = vmatprep.subr.bf16.mxu0 0
      %2648 = vmatpush1.bf16.msra.mxu0 0
      %2649 = vmatprep.subr.bf16.mxu0 0
      %2650 = vmatpush1.bf16.msra.mxu0 0
      %2651 = vmatprep.subr.bf16.mxu0 0
      %2652 = vmatpush1.bf16.msra.mxu0 0
      %2653 = vmatprep.subr.bf16.mxu0 0
      %2654 = vmatpush1.bf16.msra.mxu0 0
      %2655 = vmatprep.subr.bf16.mxu0 0
      %2656 = vmatpush1.bf16.msra.mxu0 0
      %2657 = vmatprep.subr.bf16.mxu0 0
      %2658 = vmatpush1.bf16.msra.mxu0 0
      %2659 = vmatprep.subr.bf16.mxu0 0
      %2660 = vmatpush1.bf16.msra.mxu0 0
      %2661 = vmatprep.subr.bf16.mxu0 0
      %2662 = vmatpush1.bf16.msra.mxu0 0
      %2663 = vmatprep.subr.bf16.mxu0 0
      %2664 = vmatpush1.bf16.msra.mxu0 0
      %2665 = vmatprep.subr.bf16.mxu0 0
      %2666 = vmatpush1.bf16.msra.mxu0 0
      %2667 = vmatprep.subr.bf16.mxu0 0
      %2668 = vmatpush1.bf16.msra.mxu0 0
      %2669 = vmatprep.subr.bf16.mxu0 0
      %2670 = vmatpush1.bf16.msra.mxu0 0
      %2671 = vmatprep.mubr.bf16.mxu0 0
      %2672 = vmatmul.mubr.bf16.gmra.mrb[0].mxu0 %v2592
      %v2673 = vpop.f32.mrb[0].mxu0
      %v2674 = vadd.f32 %v2564, %v2673
      %v2675 = vpop.f32.mrb[0].mxu0
      %v2676 = vpop.f32.mrb[0].mxu0
      %v2677 = vadd.f32 %v2564, %v2676
      %v2678 = vpop.f32.mrb[0].mxu0
      %2679 = vmatprep.mubr.bf16.mxu0 0
      %2680 = vmatmul.mubr.bf16.gmra.mrb[0].mxu0 %v2595
      %v2681 = vpop.f32.mrb[0].mxu0
      %v2682 = vadd.f32 %v2564, %v2681
      %v2683 = vpop.f32.mrb[0].mxu0
      %v2684 = vpop.f32.mrb[0].mxu0
      %v2685 = vadd.f32 %v2564, %v2684
      %v2686 = vpop.f32.mrb[0].mxu0
      %2687 = vmatprep.mubr.bf16.mxu0 0
      %2688 = vmatmul.mubr.bf16.gmra.mrb[0].mxu0 %v2598
      %v2689 = vpop.f32.mrb[0].mxu0
      %v2690 = vadd.f32 %v2564, %v2689
      %v2691 = vpop.f32.mrb[0].mxu0
      %v2692 = vpop.f32.mrb[0].mxu0
      %v2693 = vadd.f32 %v2564, %v2692
      %v2694 = vpop.f32.mrb[0].mxu0
      %2695 = vmatprep.mubr.bf16.mxu0 0
      %2696 = vmatmul.mubr.bf16.gmra.mrb[0].mxu0 %v2601
      %v2697 = vpop.f32.mrb[0].mxu0
      %v2698 = vadd.f32 %v2564, %v2697
      %v2699 = vpop.f32.mrb[0].mxu0
      %v2700 = vpop.f32.mrb[0].mxu0
      %v2701 = vadd.f32 %v2564, %v2700
      %v2702 = vpop.f32.mrb[0].mxu0
      %2703 = vmatprep.mubr.bf16.mxu0 0
      %2704 = vmatmul.mubr.bf16.gmra.mrb[0].mxu0 %v2604
      %v2705 = vpop.f32.mrb[0].mxu0
      %v2706 = vadd.f32 %v2564, %v2705
      %v2707 = vpop.f32.mrb[0].mxu0
      %v2708 = vpop.f32.mrb[0].mxu0
      %v2709 = vadd.f32 %v2564, %v2708
      %v2710 = vpop.f32.mrb[0].mxu0
      %2711 = vmatprep.mubr.bf16.mxu0 0
      %2712 = vmatmul.mubr.bf16.gmra.mrb[0].mxu0 %v2607
      %v2713 = vpop.f32.mrb[0].mxu0
      %v2714 = vadd.f32 %v2564, %v2713
      %v2715 = vpop.f32.mrb[0].mxu0
      %v2716 = vpop.f32.mrb[0].mxu0
      %v2717 = vadd.f32 %v2564, %v2716
      %v2718 = vpop.f32.mrb[0].mxu0
      %2719 = vmatprep.mubr.bf16.mxu0 0
      %2720 = vmatmul.mubr.bf16.gmra.mrb[0].mxu0 %v2610
      %v2721 = vpop.f32.mrb[0].mxu0
      %v2722 = vadd.f32 %v2564, %v2721
      %v2723 = vpop.f32.mrb[0].mxu0
      %v2724 = vpop.f32.mrb[0].mxu0
      %v2725 = vadd.f32 %v2564, %v2724
      %v2726 = vpop.f32.mrb[0].mxu0
      %2727 = vmatprep.mubr.bf16.mxu0 0
      %2728 = vmatmul.mubr.bf16.gmra.mrb[0].mxu0 %v2613
      %v2729 = vpop.f32.mrb[0].mxu0
      %v2730 = vadd.f32 %v2564, %v2729
      %v2731 = vpop.f32.mrb[0].mxu0
      %v2732 = vpop.f32.mrb[0].mxu0
      %v2733 = vadd.f32 %v2564, %v2732
      %v2734 = vpop.f32.mrb[0].mxu0
      %2735 = vmatprep.mubr.bf16.mxu0 0
      %2736 = vmatmul.mubr.bf16.gmra.mrb[0].mxu0 %v2616
      %v2737 = vpop.f32.mrb[0].mxu0
      %v2738 = vadd.f32 %v2564, %v2737
      %v2739 = vpop.f32.mrb[0].mxu0
      %v2740 = vpop.f32.mrb[0].mxu0
      %v2741 = vadd.f32 %v2564, %v2740
      %v2742 = vpop.f32.mrb[0].mxu0
      %2743 = vmatprep.mubr.bf16.mxu0 0
      %2744 = vmatmul.mubr.bf16.gmra.mrb[0].mxu0 %v2619
      %v2745 = vpop.f32.mrb[0].mxu0
      %v2746 = vadd.f32 %v2564, %v2745
      %v2747 = vpop.f32.mrb[0].mxu0
      %v2748 = vpop.f32.mrb[0].mxu0
      %v2749 = vadd.f32 %v2564, %v2748
      %v2750 = vpop.f32.mrb[0].mxu0
      %2751 = vmatprep.mubr.bf16.mxu0 0
      %2752 = vmatmul.mubr.bf16.gmra.mrb[0].mxu0 %v2622
      %v2753 = vpop.f32.mrb[0].mxu0
      %v2754 = vadd.f32 %v2564, %v2753
      %v2755 = vpop.f32.mrb[0].mxu0
      %v2756 = vpop.f32.mrb[0].mxu0
      %v2757 = vadd.f32 %v2564, %v2756
      %v2758 = vpop.f32.mrb[0].mxu0
      %2759 = vmatprep.mubr.bf16.mxu0 0
      %2760 = vmatmul.mubr.bf16.gmra.mrb[0].mxu0 %v2625
      %v2761 = vpop.f32.mrb[0].mxu0
      %v2762 = vadd.f32 %v2564, %v2761
      %v2763 = vpop.f32.mrb[0].mxu0
      %v2764 = vpop.f32.mrb[0].mxu0
      %v2765 = vadd.f32 %v2564, %v2764
      %v2766 = vpop.f32.mrb[0].mxu0
      %2767 = vmatprep.mubr.bf16.mxu0 0
      %2768 = vmatmul.mubr.bf16.gmra.mrb[0].mxu0 %v2628
      %v2769 = vpop.f32.mrb[0].mxu0
      %v2770 = vadd.f32 %v2564, %v2769
      %v2771 = vpop.f32.mrb[0].mxu0
      %v2772 = vpop.f32.mrb[0].mxu0
      %v2773 = vadd.f32 %v2564, %v2772
      %v2774 = vpop.f32.mrb[0].mxu0
      %2775 = vmatprep.mubr.bf16.mxu0 0
      %2776 = vmatmul.mubr.bf16.gmra.mrb[0].mxu0 %v2631
      %v2777 = vpop.f32.mrb[0].mxu0
      %v2778 = vadd.f32 %v2564, %v2777
      %v2779 = vpop.f32.mrb[0].mxu0
      %v2780 = vpop.f32.mrb[0].mxu0
      %v2781 = vadd.f32 %v2564, %v2780
      %v2782 = vpop.f32.mrb[0].mxu0
      %2783 = vmatprep.mubr.bf16.mxu0 0
      %2784 = vmatmul.mubr.bf16.gmra.mrb[0].mxu0 %v2634
      %v2785 = vpop.f32.mrb[0].mxu0
      %v2786 = vadd.f32 %v2564, %v2785
      %v2787 = vpop.f32.mrb[0].mxu0
      %v2788 = vpop.f32.mrb[0].mxu0
      %v2789 = vadd.f32 %v2564, %v2788
      %v2790 = vpop.f32.mrb[0].mxu0
      %2791 = vmatprep.mubr.bf16.mxu0 0
      %2792 = vmatmul.mubr.bf16.gmra.mrb[0].mxu0 %v2637
      %v2793 = vpop.f32.mrb[0].mxu0
      %v2794 = vadd.f32 %v2564, %v2793
      %v2795 = vpop.f32.mrb[0].mxu0
      %v2796 = vpop.f32.mrb[0].mxu0
      %v2797 = vadd.f32 %v2564, %v2796
      %v2798 = vpop.f32.mrb[0].mxu0
      %2799 = vdwg.mxu0
      %vm2800 = vcmask 23552
      %2801 = vst.msk [vmem:[%s415] sm:$0xff] %vm2800, %v2674
      %2802 = vst.msk [vmem:[%s415 + $0x8] sm:$0xff] %vm2800, %v2677
      %2803 = vst.msk [vmem:[%s415 + $0x10] sm:$0xff] %vm2800, %v2682
      %2804 = vst.msk [vmem:[%s415 + $0x18] sm:$0xff] %vm2800, %v2685
      %2805 = vst.msk [vmem:[%s415 + $0x20] sm:$0xff] %vm2800, %v2690
      %2806 = vst.msk [vmem:[%s415 + $0x28] sm:$0xff] %vm2800, %v2693
      %2807 = vst.msk [vmem:[%s415 + $0x30] sm:$0xff] %vm2800, %v2698
      %2808 = vst.msk [vmem:[%s415 + $0x38] sm:$0xff] %vm2800, %v2701
      %2809 = vst.msk [vmem:[%s415 + $0x40] sm:$0xff] %vm2800, %v2706
      %2810 = vst.msk [vmem:[%s415 + $0x48] sm:$0xff] %vm2800, %v2709
      %2811 = vst.msk [vmem:[%s415 + $0x50] sm:$0xff] %vm2800, %v2714
      %2812 = vst.msk [vmem:[%s415 + $0x58] sm:$0xff] %vm2800, %v2717
      %2813 = vst.msk [vmem:[%s415 + $0x60] sm:$0xff] %vm2800, %v2722
      %2814 = vst.msk [vmem:[%s415 + $0x68] sm:$0xff] %vm2800, %v2725
      %2815 = vst.msk [vmem:[%s415 + $0x70] sm:$0xff] %vm2800, %v2730
      %2816 = vst.msk [vmem:[%s415 + $0x78] sm:$0xff] %vm2800, %v2733
      %2817 = vst.msk [vmem:[%s415 + $0x80] sm:$0xff] %vm2800, %v2738
      %2818 = vst.msk [vmem:[%s415 + $0x88] sm:$0xff] %vm2800, %v2741
      %2819 = vst.msk [vmem:[%s415 + $0x90] sm:$0xff] %vm2800, %v2746
      %2820 = vst.msk [vmem:[%s415 + $0x98] sm:$0xff] %vm2800, %v2749
      %2821 = vst.msk [vmem:[%s415 + $0xa0] sm:$0xff] %vm2800, %v2754
      %2822 = vst.msk [vmem:[%s415 + $0xa8] sm:$0xff] %vm2800, %v2757
      %2823 = vst.msk [vmem:[%s415 + $0xb0] sm:$0xff] %vm2800, %v2762
      %2824 = vst.msk [vmem:[%s415 + $0xb8] sm:$0xff] %vm2800, %v2765
      %2825 = vst.msk [vmem:[%s415 + $0xc0] sm:$0xff] %vm2800, %v2770
      %2826 = vst.msk [vmem:[%s415 + $0xc8] sm:$0xff] %vm2800, %v2773
      %2827 = vst.msk [vmem:[%s415 + $0xd0] sm:$0xff] %vm2800, %v2778
      %2828 = vst.msk [vmem:[%s415 + $0xd8] sm:$0xff] %vm2800, %v2781
      %2829 = vst.msk [vmem:[%s415 + $0xe0] sm:$0xff] %vm2800, %v2786
      %2830 = vst.msk [vmem:[%s415 + $0xe8] sm:$0xff] %vm2800, %v2789
      %2831 = vst.msk [vmem:[%s415 + $0xf0] sm:$0xff] %vm2800, %v2794
      %2832 = vst.msk [vmem:[%s415 + $0xf8] sm:$0xff] %vm2800, %v2797
      %2865 = vrot.lane.b32.xlu0 %v1771, 3
      %v2866 = vpop.permute.xlu0 %2865
      %2867 = vrot.lane.b32.xlu0 %v1775, 3
      %v2868 = vpop.permute.xlu0 %2867
      %2869 = vrot.lane.b32.xlu0 %v1781, 3
      %v2870 = vpop.permute.xlu0 %2869
      %2871 = vrot.lane.b32.xlu0 %v1785, 3
      %v2872 = vpop.permute.xlu0 %2871
      %2873 = vrot.lane.b32.xlu0 %v1791, 3
      %v2874 = vpop.permute.xlu0 %2873
      %2875 = vrot.lane.b32.xlu0 %v1795, 3
      %v2876 = vpop.permute.xlu0 %2875
      %2877 = vrot.lane.b32.xlu0 %v1801, 3
      %v2878 = vpop.permute.xlu0 %2877
      %2879 = vrot.lane.b32.xlu0 %v1805, 3
      %v2880 = vpop.permute.xlu0 %2879
      %2881 = vrot.lane.b32.xlu0 %v1811, 3
      %v2882 = vpop.permute.xlu0 %2881
      %2883 = vrot.lane.b32.xlu0 %v1815, 3
      %v2884 = vpop.permute.xlu0 %2883
      %2885 = vrot.lane.b32.xlu0 %v1821, 3
      %v2886 = vpop.permute.xlu0 %2885
      %2887 = vrot.lane.b32.xlu0 %v1825, 3
      %v2888 = vpop.permute.xlu0 %2887
      %2889 = vrot.lane.b32.xlu0 %v1831, 3
      %v2890 = vpop.permute.xlu0 %2889
      %2891 = vrot.lane.b32.xlu0 %v1835, 3
      %v2892 = vpop.permute.xlu0 %2891
      %2893 = vrot.lane.b32.xlu0 %v1841, 3
      %v2894 = vpop.permute.xlu0 %2893
      %2895 = vrot.lane.b32.xlu0 %v1845, 3
      %v2896 = vpop.permute.xlu0 %2895
      %2897 = vrot.lane.b32.xlu0 %v1851, 3
      %v2898 = vpop.permute.xlu0 %2897
      %2899 = vrot.lane.b32.xlu0 %v1855, 3
      %v2900 = vpop.permute.xlu0 %2899
      %2901 = vrot.lane.b32.xlu0 %v1861, 3
      %v2902 = vpop.permute.xlu0 %2901
      %2903 = vrot.lane.b32.xlu0 %v1865, 3
      %v2904 = vpop.permute.xlu0 %2903
      %2905 = vrot.lane.b32.xlu0 %v1871, 3
      %v2906 = vpop.permute.xlu0 %2905
      %2907 = vrot.lane.b32.xlu0 %v1875, 3
      %v2908 = vpop.permute.xlu0 %2907
      %2909 = vrot.lane.b32.xlu0 %v1881, 3
      %v2910 = vpop.permute.xlu0 %2909
      %2911 = vrot.lane.b32.xlu0 %v1885, 3
      %v2912 = vpop.permute.xlu0 %2911
      %2913 = vrot.lane.b32.xlu0 %v1891, 3
      %v2914 = vpop.permute.xlu0 %2913
      %2915 = vrot.lane.b32.xlu0 %v1895, 3
      %v2916 = vpop.permute.xlu0 %2915
      %2917 = vrot.lane.b32.xlu0 %v1901, 3
      %v2918 = vpop.permute.xlu0 %2917
      %2919 = vrot.lane.b32.xlu0 %v1905, 3
      %v2920 = vpop.permute.xlu0 %2919
      %2921 = vrot.lane.b32.xlu0 %v1911, 3
      %v2922 = vpop.permute.xlu0 %2921
      %2923 = vrot.lane.b32.xlu0 %v1915, 3
      %v2924 = vpop.permute.xlu0 %2923
      %2925 = vrot.lane.b32.xlu0 %v1921, 3
      %v2926 = vpop.permute.xlu0 %2925
      %2927 = vrot.lane.b32.xlu0 %v1925, 3
      %v2928 = vpop.permute.xlu0 %2927
      %vm2961 = vcmask 31768
      %2962 = vst.msk [vmem:[%s415] sm:$0xff] %vm2961, %v2866
      %2963 = vst.msk [vmem:[%s415 + $0x8] sm:$0xff] %vm2961, %v2868
      %2964 = vst.msk [vmem:[%s415 + $0x10] sm:$0xff] %vm2961, %v2870
      %2965 = vst.msk [vmem:[%s415 + $0x18] sm:$0xff] %vm2961, %v2872
      %2966 = vst.msk [vmem:[%s415 + $0x20] sm:$0xff] %vm2961, %v2874
      %2967 = vst.msk [vmem:[%s415 + $0x28] sm:$0xff] %vm2961, %v2876
      %2968 = vst.msk [vmem:[%s415 + $0x30] sm:$0xff] %vm2961, %v2878
      %2969 = vst.msk [vmem:[%s415 + $0x38] sm:$0xff] %vm2961, %v2880
      %2970 = vst.msk [vmem:[%s415 + $0x40] sm:$0xff] %vm2961, %v2882
      %2971 = vst.msk [vmem:[%s415 + $0x48] sm:$0xff] %vm2961, %v2884
      %2972 = vst.msk [vmem:[%s415 + $0x50] sm:$0xff] %vm2961, %v2886
      %2973 = vst.msk [vmem:[%s415 + $0x58] sm:$0xff] %vm2961, %v2888
      %2974 = vst.msk [vmem:[%s415 + $0x60] sm:$0xff] %vm2961, %v2890
      %2975 = vst.msk [vmem:[%s415 + $0x68] sm:$0xff] %vm2961, %v2892
      %2976 = vst.msk [vmem:[%s415 + $0x70] sm:$0xff] %vm2961, %v2894
      %2977 = vst.msk [vmem:[%s415 + $0x78] sm:$0xff] %vm2961, %v2896
      %2978 = vst.msk [vmem:[%s415 + $0x80] sm:$0xff] %vm2961, %v2898
      %2979 = vst.msk [vmem:[%s415 + $0x88] sm:$0xff] %vm2961, %v2900
      %2980 = vst.msk [vmem:[%s415 + $0x90] sm:$0xff] %vm2961, %v2902
      %2981 = vst.msk [vmem:[%s415 + $0x98] sm:$0xff] %vm2961, %v2904
      %2982 = vst.msk [vmem:[%s415 + $0xa0] sm:$0xff] %vm2961, %v2906
      %2983 = vst.msk [vmem:[%s415 + $0xa8] sm:$0xff] %vm2961, %v2908
      %2984 = vst.msk [vmem:[%s415 + $0xb0] sm:$0xff] %vm2961, %v2910
      %2985 = vst.msk [vmem:[%s415 + $0xb8] sm:$0xff] %vm2961, %v2912
      %2986 = vst.msk [vmem:[%s415 + $0xc0] sm:$0xff] %vm2961, %v2914
      %2987 = vst.msk [vmem:[%s415 + $0xc8] sm:$0xff] %vm2961, %v2916
      %2988 = vst.msk [vmem:[%s415 + $0xd0] sm:$0xff] %vm2961, %v2918
      %2989 = vst.msk [vmem:[%s415 + $0xd8] sm:$0xff] %vm2961, %v2920
      %2990 = vst.msk [vmem:[%s415 + $0xe0] sm:$0xff] %vm2961, %v2922
      %2991 = vst.msk [vmem:[%s415 + $0xe8] sm:$0xff] %vm2961, %v2924
      %2992 = vst.msk [vmem:[%s415 + $0xf0] sm:$0xff] %vm2961, %v2926
      %2993 = vst.msk [vmem:[%s415 + $0xf8] sm:$0xff] %vm2961, %v2928
      %s2994 = smul.u32 32, %s23
      %p2995 = scmp.lt.s32.totalorder %s2994, 255
      %s2996 = scalar_select %p2995, %s2994, 255
      %s2997 = smul.addr %s2996, 8
      %s2998 = scalar_lea.vmem %s12, %s2997
      // Predicated region
      $region69: #{tpu_custom_call.1} parent=67 // pred_check
        %p2999 = pneg %p298
      $region70: #{tpu_custom_call.1} parent=67 // pred_check_branch
        %3001 = sbr.rel (%p2999) target = $region72
      $region71: #{tpu_custom_call.1} parent=67 // pred_region
        %s3002 = smul.u32 32, %s23
      $region72: #{tpu_custom_call.1} parent=67 // pred_fallthru
        _
    $region68: #{tpu_custom_call.1} parent=5 // pred_fallthru
      _
    %p3003 = scmp.le.s32.totalorder 2, %s18
    // Predicated region
    $region73: #{tpu_custom_call.1} parent=5 // pred_check
      %p3004 = pneg %p3003
    $region74: #{tpu_custom_call.1} parent=5 // pred_check_branch
      %3006 = sbr.rel (%p3004) target = $region76
    $region75: #{tpu_custom_call.1} parent=5 // pred_region
      %s3007 = ssub.s32 %s18, 2
      // Predicated region
      $region77: #{tpu_custom_call.1} parent=75 // pred_check
        %p3008 = pneg %p304
      $region78: #{tpu_custom_call.1} parent=75 // pred_check_branch
        %3010 = sbr.rel (%p3008) target = $region80
      $region79: #{tpu_custom_call.1} parent=75 // pred_region
        %s3011 = smul.u32 32, %s24
        %p3012 = scmp.lt.s32.totalorder %s3011, 255
        %s3013 = scalar_select %p3012, %s3011, 255
        %s3014 = smul.addr %s3013, 8
        %s3015 = scalar_lea.vmem %s12, %s3014
      $region80: #{tpu_custom_call.1} parent=75 // pred_fallthru
        _
    $region76: #{tpu_custom_call.1} parent=5 // pred_fallthru
      _
  $region6: #{tpu_custom_call.1} parent=0 // loop_footer
    %s22 = sadd.s32 1, %s18
  $region7: #{tpu_custom_call.1} parent=0 // loop_footer_branch
    %17 = sbr.rel target = $region3
  $region8: #{tpu_custom_call.1} parent=0 // loop_exit
    _

</llo_original>
